<compile_context>
chip_gen: v7x
topology: tpu7x:2x2x1
jax: 0.10.0
libtpu: 0.0.40
codegen_flags: <defaults>
</compile_context>

<pallas_src>
import functools

import jax
import jax.numpy as jnp
from jax import lax
from jax.experimental import pallas as pl
from jax.experimental.pallas import tpu as pltpu

LEAKY_SLOPE = 0.2
EPS_BN = 1e-5
NEG_INF = -1e30          # finite mask value (avoids inf-inf NaNs)
NEG_THRESH = -1e29       # rows whose running max stays below this have no in-edges


def _leaky_relu(x):
    return jnp.where(x >= 0, x, LEAKY_SLOPE * x)


def _pick_tile(n):
    """Node-axis tile: a lane-aligned (multiple-of-128) divisor of n, else the full n.
    256 keeps the double-buffered adj (f32) / alpha (bf16) tiles well under 64 MiB VMEM."""
    for t in (256, 512, 128):
        if n % t == 0 and n > t:
            return t
    # TODO(synk): pad ragged N to a tile multiple instead of falling back to one tile.
    return n


# ---------------------------------------------------------------------------
# Pallas kernels
# ---------------------------------------------------------------------------
def proj_kernel(feat_ref, wfc_ref, wres_ref, al_ref, ar_ref, hr_ref,
                h0_ref, h0b_ref, res_ref, elT_ref, er_ref, arh_ref):
    """Per-(head, row-tile): feature/residual projection + per-node attention terms."""
    x = feat_ref[...]                                                   # (TM, Cin)
    h0 = jnp.dot(x, wfc_ref[0], preferred_element_type=jnp.float32)     # (TM, F)
    h0_ref[0] = h0
    h0b_ref[0] = h0.astype(h0b_ref.dtype)                               # bf16 operand for hop 1
    res_ref[0] = jnp.dot(x, wres_ref[0], preferred_element_type=jnp.float32)
    # source ('left') term, produced directly in lane-dense (1, TM) layout
    elT_ref[0] = lax.dot_general(al_ref[0], h0, (((1,), (1,)), ((), ())),
                                 preferred_element_type=jnp.float32)
    # destination ('right') term and hop-attention key term, (TM, 1)
    er_ref[0] = jnp.sum(h0 * ar_ref[0], axis=-1, keepdims=True)
    arh_ref[0] = jnp.sum(h0 * hr_ref[0], axis=-1, keepdims=True)


def edge_stats_kernel(er_ref, elT_ref, adj_ref, m_ref, l_ref):
    """Flash-style online max / denom of the masked edge softmax, streamed over
    source-column tiles (innermost grid axis, 'arbitrary')."""
    k = pl.program_id(2)

    @pl.when(k == 0)
    def _():
        m_ref[0] = jnp.full(m_ref.shape[1:], NEG_INF, dtype=m_ref.dtype)
        l_ref[0] = jnp.zeros(l_ref.shape[1:], dtype=l_ref.dtype)

    logits = _leaky_relu(er_ref[0] + elT_ref[0])                        # (TM, TK)
    masked = jnp.where(adj_ref[...] > 0, logits, NEG_INF)
    m_prev = m_ref[0]
    m_new = jnp.maximum(m_prev, jnp.max(masked, axis=-1, keepdims=True))
    # once a row has any edge, exp(NEG_INF - m_new) underflows to exactly 0
    p = jnp.exp(masked - m_new)
    l_ref[0] = l_ref[0] * jnp.exp(m_prev - m_new) + jnp.sum(p, axis=-1, keepdims=True)
    m_ref[0] = m_new


def edge_alpha_hop1_kernel(er_ref, elT_ref, adj_ref, m_ref, l_ref, h0b_ref,
                           alpha_ref, h1_ref, h1b_ref):
    """Fused pass: write normalized edge-softmax weights (bf16) for one
    (head, row tile, col tile) AND accumulate the first diffusion hop
    h1[row tile] += alpha @ h0[col tile] while the alpha tile is still in VMEM."""
    k = pl.program_id(2)

    @pl.when(k == 0)
    def _():
        h1_ref[0] = jnp.zeros(h1_ref.shape[1:], dtype=h1_ref.dtype)

    logits = _leaky_relu(er_ref[0] + elT_ref[0])                        # (TM, TK)
    masked = jnp.where(adj_ref[...] > 0, logits, NEG_INF)
    m = m_ref[0]
    e = jnp.exp(masked - m)
    # zero-in-degree rows (m stuck at NEG_INF) get alpha == 0 (matches sparse aggregation)
    alpha = jnp.where(m > NEG_THRESH, e / l_ref[0], 0.0).astype(alpha_ref.dtype)
    alpha_ref[0] = alpha
    h1_ref[0] += jnp.dot(alpha, h0b_ref[0], preferred_element_type=jnp.float32)

    @pl.when(k == pl.num_programs(2) - 1)
    def _():
        h1b_ref[0] = h1_ref[0].astype(h1b_ref.dtype)


def diffuse_kernel(alpha_ref, hprevb_ref, out_ref, outb_ref):
    """One diffusion hop: out[row tile] += alpha[row tile, col tile] @ h_prev[col tile].
    bf16 MXU operands, f32 accumulation in the resident output block; also emits the
    bf16 copy used as the next hop's operand."""
    k = pl.program_id(2)

    @pl.when(k == 0)
    def _():
        out_ref[0] = jnp.zeros(out_ref.shape[1:], dtype=out_ref.dtype)

    out_ref[0] += jnp.dot(alpha_ref[0], hprevb_ref[0],
                          preferred_element_type=jnp.float32)

    @pl.when(k == pl.num_programs(2) - 1)
    def _():
        outb_ref[0] = out_ref[0].astype(outb_ref.dtype)


def _hop_softmax_combine(hops_ref, arh, hl, nhops):
    """Online softmax over the K+1 hops (keeps ~4 live tiles instead of 3*(K+1))."""
    h_k = hops_ref[0]                                                   # (H, TM, F)
    s = _leaky_relu(jnp.sum(h_k * hl, axis=-1, keepdims=True) + arh)    # (H, TM, 1)
    m = s
    l = jnp.ones_like(s)
    acc = h_k
    for k in range(1, nhops):
        h_k = hops_ref[k]
        s = _leaky_relu(jnp.sum(h_k * hl, axis=-1, keepdims=True) + arh)
        m_new = jnp.maximum(m, s)
        c = jnp.exp(m - m_new)
        p = jnp.exp(s - m_new)
        acc = acc * c + h_k * p
        l = l * c + p
        m = m_new
    return acc / l                                                      # (H, TM, F)


def combine_bn_relu_kernel(hops_ref, res_ref, arh_ref, hl_ref,
                           g_ref, b_ref, mu_ref, var_ref, out_ref, *, num_heads, nhops):
    """Hop-attention combine + residual + fused BatchNorm(eval) + ReLU, lane-dense output."""
    rst = _hop_softmax_combine(hops_ref, arh_ref[...], hl_ref[...], nhops)
    rst = rst + res_ref[...]                                            # (H, TM, F)
    flat = jnp.concatenate([rst[h] for h in range(num_heads)], axis=-1)  # (TM, H*F)
    inv = lax.rsqrt(var_ref[...] + EPS_BN)
    y = (flat - mu_ref[...]) * inv * g_ref[...] + b_ref[...]
    out_ref[...] = jnp.maximum(y, 0.0)


def combine_mean_bias_kernel(hops_ref, res_ref, arh_ref, hl_ref, bias_ref, out_ref,
                             *, num_heads, nhops):
    """Hop-attention combine + residual + mean over heads + output bias (last layer)."""
    rst = _hop_softmax_combine(hops_ref, arh_ref[...], hl_ref[...], nhops)
    rst = rst + res_ref[...]                                            # (H, TM, F)
    acc = rst[0]
    for h in range(1, num_heads):
        acc = acc + rst[h]
    out_ref[...] = acc * (1.0 / num_heads) + bias_ref[...]


# ---------------------------------------------------------------------------
# pallas_call wrappers
# ---------------------------------------------------------------------------
def _proj(feat, p, tm):
    N, Cin = feat.shape
    H, _, F = p["wfc"].shape
    return pl.pallas_call(
        proj_kernel,
        out_shape=(
            jax.ShapeDtypeStruct((H, N, F), jnp.float32),    # h0   (head-major)
            jax.ShapeDtypeStruct((H, N, F), jnp.bfloat16),   # h0b  (hop-1 operand)
            jax.ShapeDtypeStruct((H, N, F), jnp.float32),    # res
            jax.ShapeDtypeStruct((H, 1, N), jnp.float32),    # elT  (source term, lane-dense)
            jax.ShapeDtypeStruct((H, N, 1), jnp.float32),    # er   (dest term)
            jax.ShapeDtypeStruct((H, N, 1), jnp.float32),    # arh  (hop_r term)
        ),
        grid=(H, N // tm),
        in_specs=[
            pl.BlockSpec((tm, Cin), lambda h, i: (i, 0)),
            pl.BlockSpec((1, Cin, F), lambda h, i: (h, 0, 0)),
            pl.BlockSpec((1, Cin, F), lambda h, i: (h, 0, 0)),
            pl.BlockSpec((1, 1, F), lambda h, i: (h, 0, 0)),
            pl.BlockSpec((1, 1, F), lambda h, i: (h, 0, 0)),
            pl.BlockSpec((1, 1, F), lambda h, i: (h, 0, 0)),
        ],
        out_specs=(
            pl.BlockSpec((1, tm, F), lambda h, i: (h, i, 0)),
            pl.BlockSpec((1, tm, F), lambda h, i: (h, i, 0)),
            pl.BlockSpec((1, tm, F), lambda h, i: (h, i, 0)),
            pl.BlockSpec((1, 1, tm), lambda h, i: (h, 0, i)),
            pl.BlockSpec((1, tm, 1), lambda h, i: (h, i, 0)),
            pl.BlockSpec((1, tm, 1), lambda h, i: (h, i, 0)),
        ),
        compiler_params=pltpu.CompilerParams(dimension_semantics=("parallel", "parallel")),
    )(feat, p["wfc"], p["wres"], p["attn_l"], p["attn_r"], p["hop_r"])


def _edge_stats(er, elT, adj, tm, tk):
    H = er.shape[0]
    N = adj.shape[0]
    return pl.pallas_call(
        edge_stats_kernel,
        out_shape=(jax.ShapeDtypeStruct((H, N, 1), jnp.float32),
                   jax.ShapeDtypeStruct((H, N, 1), jnp.float32)),
        grid=(H, N // tm, N // tk),
        in_specs=[
            pl.BlockSpec((1, tm, 1), lambda h, i, k: (h, i, 0)),
            pl.BlockSpec((1, 1, tk), lambda h, i, k: (h, 0, k)),
            pl.BlockSpec((tm, tk), lambda h, i, k: (i, k)),
        ],
        out_specs=(pl.BlockSpec((1, tm, 1), lambda h, i, k: (h, i, 0)),
                   pl.BlockSpec((1, tm, 1), lambda h, i, k: (h, i, 0))),
        compiler_params=pltpu.CompilerParams(
            dimension_semantics=("parallel", "parallel", "arbitrary")),
    )(er, elT, adj)


def _edge_alpha_hop1(er, elT, adj, m, l, h0b, tm, tk):
    H = er.shape[0]
    N = adj.shape[0]
    F = h0b.shape[-1]
    return pl.pallas_call(
        edge_alpha_hop1_kernel,
        out_shape=(jax.ShapeDtypeStruct((H, N, N), jnp.bfloat16),   # alpha
                   jax.ShapeDtypeStruct((H, N, F), jnp.float32),    # hop 1 (f32)
                   jax.ShapeDtypeStruct((H, N, F), jnp.bfloat16)),  # hop 1 (bf16 operand)
        grid=(H, N // tm, N // tk),
        in_specs=[
            pl.BlockSpec((1, tm, 1), lambda h, i, k: (h, i, 0)),
            pl.BlockSpec((1, 1, tk), lambda h, i, k: (h, 0, k)),
            pl.BlockSpec((tm, tk), lambda h, i, k: (i, k)),
            pl.BlockSpec((1, tm, 1), lambda h, i, k: (h, i, 0)),
            pl.BlockSpec((1, tm, 1), lambda h, i, k: (h, i, 0)),
            pl.BlockSpec((1, tk, F), lambda h, i, k: (h, k, 0)),
        ],
        out_specs=(pl.BlockSpec((1, tm, tk), lambda h, i, k: (h, i, k)),
                   pl.BlockSpec((1, tm, F), lambda h, i, k: (h, i, 0)),
                   pl.BlockSpec((1, tm, F), lambda h, i, k: (h, i, 0))),
        compiler_params=pltpu.CompilerParams(
            dimension_semantics=("parallel", "parallel", "arbitrary")),
    )(er, elT, adj, m, l, h0b)


def _diffuse(alpha, h_prev_b16, tm, tk):
    H, N, F = h_prev_b16.shape
    return pl.pallas_call(
        diffuse_kernel,
        out_shape=(jax.ShapeDtypeStruct((H, N, F), jnp.float32),
                   jax.ShapeDtypeStruct((H, N, F), jnp.bfloat16)),
        grid=(H, N // tm, N // tk),
        in_specs=[
            pl.BlockSpec((1, tm, tk), lambda h, i, k: (h, i, k)),
            pl.BlockSpec((1, tk, F), lambda h, i, k: (h, k, 0)),
        ],
        out_specs=(pl.BlockSpec((1, tm, F), lambda h, i, k: (h, i, 0)),
                   pl.BlockSpec((1, tm, F), lambda h, i, k: (h, i, 0))),
        compiler_params=pltpu.CompilerParams(
            dimension_semantics=("parallel", "parallel", "arbitrary")),
    )(alpha, h_prev_b16)


def _combine_bn_relu(hops, res, arh, hop_l, bn, tm):
    nhops, H, N, F = hops.shape
    C = H * F
    g, b, mu, var = bn
    kernel = functools.partial(combine_bn_relu_kernel, num_heads=H, nhops=nhops)
    return pl.pallas_call(
        kernel,
        out_shape=jax.ShapeDtypeStruct((N, C), jnp.float32),
        grid=(N // tm,),
        in_specs=[
            pl.BlockSpec((nhops, H, tm, F), lambda i: (0, 0, i, 0)),
            pl.BlockSpec((H, tm, F), lambda i: (0, i, 0)),
            pl.BlockSpec((H, tm, 1), lambda i: (0, i, 0)),
            pl.BlockSpec((H, 1, F), lambda i: (0, 0, 0)),
            pl.BlockSpec((1, C), lambda i: (0, 0)),
            pl.BlockSpec((1, C), lambda i: (0, 0)),
            pl.BlockSpec((1, C), lambda i: (0, 0)),
            pl.BlockSpec((1, C), lambda i: (0, 0)),
        ],
        out_specs=pl.BlockSpec((tm, C), lambda i: (i, 0)),
        compiler_params=pltpu.CompilerParams(dimension_semantics=("parallel",)),
    )(hops, res, arh, hop_l, g, b, mu, var)


def _combine_mean_bias(hops, res, arh, hop_l, bias, tm):
    nhops, H, N, F = hops.shape
    kernel = functools.partial(combine_mean_bias_kernel, num_heads=H, nhops=nhops)
    return pl.pallas_call(
        kernel,
        out_shape=jax.ShapeDtypeStruct((N, F), jnp.float32),
        grid=(N // tm,),
        in_specs=[
            pl.BlockSpec((nhops, H, tm, F), lambda i: (0, 0, i, 0)),
            pl.BlockSpec((H, tm, F), lambda i: (0, i, 0)),
            pl.BlockSpec((H, tm, 1), lambda i: (0, i, 0)),
            pl.BlockSpec((H, 1, F), lambda i: (0, 0, 0)),
            pl.BlockSpec((1, F), lambda i: (0, 0)),
        ],
        out_specs=pl.BlockSpec((tm, F), lambda i: (i, 0)),
        compiler_params=pltpu.CompilerParams(dimension_semantics=("parallel",)),
    )(hops, res, arh, hop_l, bias)


def agdn_conv_layer(feat, adj, p, K, *, bn=None, final_bias=None):
    N = feat.shape[0]
    tm = _pick_tile(N)
    tk = _pick_tile(N)
    h0, h0b, res, elT, er, arh = _proj(feat, p, tm)
    hops = [h0]
    if K >= 1:
        m, l = _edge_stats(er, elT, adj, tm, tk)
        # hop 1 is fused with the alpha write (alpha tile reused while still in VMEM)
        alpha, h1, hb = _edge_alpha_hop1(er, elT, adj, m, l, h0b, tm, tk)
        hops.append(h1)
        for _ in range(K - 1):
            h_next, hb = _diffuse(alpha, hb, tm, tk)
            hops.append(h_next)
    hstack = jnp.stack(hops, axis=0)                     # (K+1, H, N, F): tiny vs alpha traffic
    if final_bias is None:
        return _combine_bn_relu(hstack, res, arh, p["hop_l"], bn, tm)
    return _combine_mean_bias(hstack, res, arh, p["hop_l"], final_bias, tm)


def mem_agdn_forward(feat, adj, params, K):
    h = feat                                             # input_drop / dropout are identity (eval)
    for i in range(len(params["convs"]) - 1):
        h = agdn_conv_layer(h, adj, params["convs"][i], K, bn=params["norms"][i])
    return agdn_conv_layer(h, adj, params["convs"][-1], K, final_bias=params["bias"])


# ---------------------------------------------------------------------------
# Pure-JAX reference (mirrors the kernels' precision policy: bf16 alpha / bf16
# diffusion operands with f32 accumulation, everything else f32).
# ---------------------------------------------------------------------------
def agdn_conv_ref(feat, adj, p, K):
    hi = lax.Precision.HIGHEST
    H = p["wfc"].shape[0]
    heads = []
    for h in range(H):
        hs = jnp.dot(feat, p["wfc"][h], precision=hi)
        res = jnp.dot(feat, p["wres"][h], precision=hi)
        el = jnp.sum(hs * p["attn_l"][h], axis=-1, keepdims=True)
        er = jnp.sum(hs * p["attn_r"][h], axis=-1, keepdims=True)
        logits = _leaky_relu(er + el.T)
        masked = jnp.where(adj > 0, logits, NEG_INF)
        m = jnp.max(masked, axis=-1, keepdims=True)
        e = jnp.exp(masked - m)
        l = jnp.sum(e, axis=-1, keepdims=True)
        alpha = jnp.where(m > NEG_THRESH, e / l, 0.0).astype(jnp.bfloat16)
        hops = [hs]
        cur = hs
        for _ in range(K):
            cur = jnp.dot(alpha, cur.astype(jnp.bfloat16),
                          preferred_element_type=jnp.float32)
            hops.append(cur)
        a_r = jnp.sum(hs * p["hop_r"][h], axis=-1, keepdims=True)
        scores = jnp.stack(
            [_leaky_relu(jnp.sum(hk * p["hop_l"][h], axis=-1, keepdims=True) + a_r)
             for hk in hops], axis=0)                    # (K+1, N, 1)
        w = jax.nn.softmax(scores, axis=0)
        rst = sum(hk * w[k] for k, hk in enumerate(hops)) + res
        heads.append(rst)
    return heads


def mem_agdn_ref(feat, adj, params, K):
    h = feat
    for i in range(len(params["convs"]) - 1):
        heads = agdn_conv_ref(h, adj, params["convs"][i], K)
        h = jnp.concatenate(heads, axis=-1)              # torch .flatten(1)
        g, b, m, v = params["norms"][i]
        h = jnp.maximum((h - m) / jnp.sqrt(v + EPS_BN) * g + b, 0.0)
    heads = agdn_conv_ref(h, adj, params["convs"][-1], K)
    return sum(heads) / len(heads) + params["bias"]


# ---------------------------------------------------------------------------
# Deterministic parameter init
# ---------------------------------------------------------------------------
def init_conv(key, in_feats, out_feats, heads):
    ks = jax.random.split(key, 6)
    s_fc = (2.0 / (in_feats + out_feats)) ** 0.5
    return dict(
        wfc=jax.random.normal(ks[0], (heads, in_feats, out_feats), jnp.float32) * s_fc,
        wres=jax.random.normal(ks[1], (heads, in_feats, out_feats), jnp.float32) * s_fc,
        attn_l=jax.random.normal(ks[2], (heads, 1, out_feats), jnp.float32) * 0.1,
        attn_r=jax.random.normal(ks[3], (heads, 1, out_feats), jnp.float32) * 0.1,
        hop_l=jax.random.normal(ks[4], (heads, 1, out_feats), jnp.float32) * 0.1,
        hop_r=jax.random.normal(ks[5], (heads, 1, out_feats), jnp.float32) * 0.1,
    )


def init_bn(C):
    # BatchNorm1d.reset_parameters(): weight=1, bias=0, running_mean=0, running_var=1 (eval mode)
    return (jnp.ones((1, C), jnp.float32), jnp.zeros((1, C), jnp.float32),
            jnp.zeros((1, C), jnp.float32), jnp.ones((1, C), jnp.float32))


def init_params(key, in_feats, n_hidden, out_feats, n_layers, num_heads):
    keys = jax.random.split(key, n_layers)
    convs, norms = [], []
    convs.append(init_conv(keys[0], in_feats, n_hidden, num_heads))
    norms.append(init_bn(num_heads * n_hidden))
    for l in range(n_layers - 2):
        convs.append(init_conv(keys[l + 1], n_hidden * num_heads, n_hidden, num_heads))
        norms.append(init_bn(num_heads * n_hidden))
    convs.append(init_conv(keys[n_layers - 1], n_hidden * num_heads, out_feats, num_heads))
    bias = jnp.zeros((1, out_feats), jnp.float32)        # torch.nn.init.zeros_(self.bias)
    return {"convs": convs, "norms": norms, "bias": bias}


# ---------------------------------------------------------------------------
if __name__ == "__main__":
    N, in_feats, n_hidden, out_feats = 32, 8, 16, 8
    n_layers, num_heads, K = 3, 2, 2

    key = jax.random.PRNGKey(0)
    kf, ka, kp = jax.random.split(key, 3)
    feat = jax.random.normal(kf, (N, in_feats), jnp.float32)
    adj = (jax.random.uniform(ka, (N, N)) < 0.2).astype(jnp.float32)
    adj = jnp.maximum(adj, jnp.eye(N, dtype=jnp.float32))   # self loops -> no zero in-degree
    params = init_params(kp, in_feats, n_hidden, out_feats, n_layers, num_heads)

    out = mem_agdn_forward(feat, adj, params, K)
    out = jax.block_until_ready(out)
    assert out.shape == (N, out_feats)

    ref = mem_agdn_ref(feat, adj, params, K)
    max_diff = float(jnp.max(jnp.abs(out - ref)))
    assert max_diff < 1e-2, f"kernel/reference mismatch: {max_diff}"

    print("KERNEL_OK")
</pallas_src>

<mosaic_0001>
module attributes {stable_mosaic.version = 11 : i64} {
  func.func @proj_kernel(%arg0: i32, %arg1: i32, %arg2: memref<32x8xf32, #tpu.memory_space<vmem>>, %arg3: memref<1x8x16xf32, #tpu.memory_space<vmem>>, %arg4: memref<1x8x16xf32, #tpu.memory_space<vmem>>, %arg5: memref<1x1x16xf32, #tpu.memory_space<vmem>>, %arg6: memref<1x1x16xf32, #tpu.memory_space<vmem>>, %arg7: memref<1x1x16xf32, #tpu.memory_space<vmem>>, %arg8: memref<1x32x16xf32, #tpu.memory_space<vmem>>, %arg9: memref<1x32x16xbf16, #tpu.memory_space<vmem>>, %arg10: memref<1x32x16xf32, #tpu.memory_space<vmem>>, %arg11: memref<1x1x32xf32, #tpu.memory_space<vmem>>, %arg12: memref<1x32x1xf32, #tpu.memory_space<vmem>>, %arg13: memref<1x32x1xf32, #tpu.memory_space<vmem>>) attributes {dimension_semantics = [#tpu.dimension_semantics<parallel>, #tpu.dimension_semantics<parallel>], iteration_bounds = array<i64: 2, 1>, scalar_prefetch = 0 : i64, scratch_operands = 0 : i64, tpu.core_type = #tpu.core_type<tc>, window_params = [{transform_indices = @transform_0, window_bounds = array<i64: 32, 8>}, {transform_indices = @transform_1, window_bounds = array<i64: 1, 8, 16>}, {transform_indices = @transform_2, window_bounds = array<i64: 1, 8, 16>}, {transform_indices = @transform_3, window_bounds = array<i64: 1, 1, 16>}, {transform_indices = @transform_4, window_bounds = array<i64: 1, 1, 16>}, {transform_indices = @transform_5, window_bounds = array<i64: 1, 1, 16>}, {transform_indices = @transform_6, window_bounds = array<i64: 1, 32, 16>}, {transform_indices = @transform_7, window_bounds = array<i64: 1, 32, 16>}, {transform_indices = @transform_8, window_bounds = array<i64: 1, 32, 16>}, {transform_indices = @transform_9, window_bounds = array<i64: 1, 1, 32>}, {transform_indices = @transform_10, window_bounds = array<i64: 1, 32, 1>}, {transform_indices = @transform_11, window_bounds = array<i64: 1, 32, 1>}]} {
    %c0 = arith.constant 0 : index
    %c0_0 = arith.constant 0 : index
    %0 = vector.load %arg2[%c0, %c0_0] : memref<32x8xf32, #tpu.memory_space<vmem>>, vector<32x8xf32>
    %c0_1 = arith.constant 0 : index
    %c0_2 = arith.constant 0 : index
    %c0_3 = arith.constant 0 : index
    %1 = vector.load %arg3[%c0_1, %c0_2, %c0_3] : memref<1x8x16xf32, #tpu.memory_space<vmem>>, vector<1x8x16xf32>
    %2 = vector.shape_cast %1 : vector<1x8x16xf32> to vector<8x16xf32>
    %cst = arith.constant dense<0.000000e+00> : vector<32x16xf32>
    %3 = tpu.matmul %0, %2, %cst {dimension_numbers = #tpu.dot_dimension_numbers<[1], [0], [0], [1], [0, 0, 1, 1], [], []>} : vector<32x8xf32>, vector<8x16xf32>, vector<32x16xf32> -> vector<32x16xf32>
    %c0_4 = arith.constant 0 : index
    %c0_5 = arith.constant 0 : index
    %c0_6 = arith.constant 0 : index
    %4 = vector.load %arg8[%c0_4, %c0_5, %c0_6] : memref<1x32x16xf32, #tpu.memory_space<vmem>>, vector<1x32x16xf32>
    %5 = vector.shape_cast %4 : vector<1x32x16xf32> to vector<32x16xf32>
    %6 = vector.shape_cast %3 : vector<32x16xf32> to vector<1x32x16xf32>
    tpu.vector_store %arg8[%c0_4, %c0_5, %c0_6], %6 {strides = array<i32>} : memref<1x32x16xf32, #tpu.memory_space<vmem>>, vector<1x32x16xf32>,
    %7 = arith.truncf %3 : vector<32x16xf32> to vector<32x16xbf16>
    %c0_7 = arith.constant 0 : index
    %c0_8 = arith.constant 0 : index
    %c0_9 = arith.constant 0 : index
    %8 = vector.load %arg9[%c0_7, %c0_8, %c0_9] : memref<1x32x16xbf16, #tpu.memory_space<vmem>>, vector<1x32x16xbf16>
    %9 = vector.shape_cast %8 : vector<1x32x16xbf16> to vector<32x16xbf16>
    %10 = vector.shape_cast %7 : vector<32x16xbf16> to vector<1x32x16xbf16>
    tpu.vector_store %arg9[%c0_7, %c0_8, %c0_9], %10 {strides = array<i32>} : memref<1x32x16xbf16, #tpu.memory_space<vmem>>, vector<1x32x16xbf16>,
    %c0_10 = arith.constant 0 : index
    %c0_11 = arith.constant 0 : index
    %c0_12 = arith.constant 0 : index
    %11 = vector.load %arg4[%c0_10, %c0_11, %c0_12] : memref<1x8x16xf32, #tpu.memory_space<vmem>>, vector<1x8x16xf32>
    %12 = vector.shape_cast %11 : vector<1x8x16xf32> to vector<8x16xf32>
    %cst_13 = arith.constant dense<0.000000e+00> : vector<32x16xf32>
    %13 = tpu.matmul %0, %12, %cst_13 {dimension_numbers = #tpu.dot_dimension_numbers<[1], [0], [0], [1], [0, 0, 1, 1], [], []>} : vector<32x8xf32>, vector<8x16xf32>, vector<32x16xf32> -> vector<32x16xf32>
    %c0_14 = arith.constant 0 : index
    %c0_15 = arith.constant 0 : index
    %c0_16 = arith.constant 0 : index
    %14 = vector.load %arg10[%c0_14, %c0_15, %c0_16] : memref<1x32x16xf32, #tpu.memory_space<vmem>>, vector<1x32x16xf32>
    %15 = vector.shape_cast %14 : vector<1x32x16xf32> to vector<32x16xf32>
    %16 = vector.shape_cast %13 : vector<32x16xf32> to vector<1x32x16xf32>
    tpu.vector_store %arg10[%c0_14, %c0_15, %c0_16], %16 {strides = array<i32>} : memref<1x32x16xf32, #tpu.memory_space<vmem>>, vector<1x32x16xf32>,
    %c0_17 = arith.constant 0 : index
    %c0_18 = arith.constant 0 : index
    %c0_19 = arith.constant 0 : index
    %17 = vector.load %arg5[%c0_17, %c0_18, %c0_19] : memref<1x1x16xf32, #tpu.memory_space<vmem>>, vector<1x1x16xf32>
    %18 = vector.shape_cast %17 : vector<1x1x16xf32> to vector<1x16xf32>
    %cst_20 = arith.constant dense<0.000000e+00> : vector<1x32xf32>
    %19 = tpu.matmul %18, %3, %cst_20 {dimension_numbers = #tpu.dot_dimension_numbers<[1], [1], [0], [0], [0, 0, 1, 0], [], []>} : vector<1x16xf32>, vector<32x16xf32>, vector<1x32xf32> -> vector<1x32xf32>
    %c0_21 = arith.constant 0 : index
    %c0_22 = arith.constant 0 : index
    %c0_23 = arith.constant 0 : index
    %20 = vector.load %arg11[%c0_21, %c0_22, %c0_23] : memref<1x1x32xf32, #tpu.memory_space<vmem>>, vector<1x1x32xf32>
    %21 = vector.shape_cast %20 : vector<1x1x32xf32> to vector<1x32xf32>
    %22 = vector.shape_cast %19 : vector<1x32xf32> to vector<1x1x32xf32>
    tpu.vector_store %arg11[%c0_21, %c0_22, %c0_23], %22 {strides = array<i32>} : memref<1x1x32xf32, #tpu.memory_space<vmem>>, vector<1x1x32xf32>,
    %c0_24 = arith.constant 0 : index
    %c0_25 = arith.constant 0 : index
    %c0_26 = arith.constant 0 : index
    %23 = vector.load %arg6[%c0_24, %c0_25, %c0_26] : memref<1x1x16xf32, #tpu.memory_space<vmem>>, vector<1x1x16xf32>
    %24 = vector.shape_cast %23 : vector<1x1x16xf32> to vector<1x16xf32>
    %25 = vector.broadcast %24 : vector<1x16xf32> to vector<32x16xf32>
    %26 = arith.mulf %3, %25 : vector<32x16xf32>
    %cst_27 = arith.constant dense<0.000000e+00> : vector<32xf32>
    %27 = vector.multi_reduction <add>, %26, %cst_27 [1] : vector<32x16xf32> to vector<32xf32>
    %28 = vector.shape_cast %27 : vector<32xf32> to vector<32x1xf32>
    %c0_28 = arith.constant 0 : index
    %c0_29 = arith.constant 0 : index
    %c0_30 = arith.constant 0 : index
    %29 = vector.load %arg12[%c0_28, %c0_29, %c0_30] : memref<1x32x1xf32, #tpu.memory_space<vmem>>, vector<1x32x1xf32>
    %30 = vector.shape_cast %29 : vector<1x32x1xf32> to vector<32x1xf32>
    %31 = vector.shape_cast %28 : vector<32x1xf32> to vector<1x32x1xf32>
    tpu.vector_store %arg12[%c0_28, %c0_29, %c0_30], %31 {strides = array<i32>} : memref<1x32x1xf32, #tpu.memory_space<vmem>>, vector<1x32x1xf32>,
    %c0_31 = arith.constant 0 : index
    %c0_32 = arith.constant 0 : index
    %c0_33 = arith.constant 0 : index
    %32 = vector.load %arg7[%c0_31, %c0_32, %c0_33] : memref<1x1x16xf32, #tpu.memory_space<vmem>>, vector<1x1x16xf32>
    %33 = vector.shape_cast %32 : vector<1x1x16xf32> to vector<1x16xf32>
    %34 = vector.broadcast %33 : vector<1x16xf32> to vector<32x16xf32>
    %35 = arith.mulf %3, %34 : vector<32x16xf32>
    %cst_34 = arith.constant dense<0.000000e+00> : vector<32xf32>
    %36 = vector.multi_reduction <add>, %35, %cst_34 [1] : vector<32x16xf32> to vector<32xf32>
    %37 = vector.shape_cast %36 : vector<32xf32> to vector<32x1xf32>
    %c0_35 = arith.constant 0 : index
    %c0_36 = arith.constant 0 : index
    %c0_37 = arith.constant 0 : index
    %38 = vector.load %arg13[%c0_35, %c0_36, %c0_37] : memref<1x32x1xf32, #tpu.memory_space<vmem>>, vector<1x32x1xf32>
    %39 = vector.shape_cast %38 : vector<1x32x1xf32> to vector<32x1xf32>
    %40 = vector.shape_cast %37 : vector<32x1xf32> to vector<1x32x1xf32>
    tpu.vector_store %arg13[%c0_35, %c0_36, %c0_37], %40 {strides = array<i32>} : memref<1x32x1xf32, #tpu.memory_space<vmem>>, vector<1x32x1xf32>,
    return
  }
  func.func @transform_0(%arg0: i32, %arg1: i32) -> (i32, i32) {
    %c0_i32 = arith.constant 0 : i32
    %c0_i32_0 = arith.constant 0 : i32
    return %arg1, %c0_i32 : i32, i32
  }
  func.func @transform_1(%arg0: i32, %arg1: i32) -> (i32, i32, i32) {
    %c0_i32 = arith.constant 0 : i32
    %c0_i32_0 = arith.constant 0 : i32
    %c0_i32_1 = arith.constant 0 : i32
    return %arg0, %c0_i32, %c0_i32_0 : i32, i32, i32
  }
  func.func @transform_2(%arg0: i32, %arg1: i32) -> (i32, i32, i32) {
    %c0_i32 = arith.constant 0 : i32
    %c0_i32_0 = arith.constant 0 : i32
    %c0_i32_1 = arith.constant 0 : i32
    return %arg0, %c0_i32, %c0_i32_0 : i32, i32, i32
  }
  func.func @transform_3(%arg0: i32, %arg1: i32) -> (i32, i32, i32) {
    %c0_i32 = arith.constant 0 : i32
    %c0_i32_0 = arith.constant 0 : i32
    %c0_i32_1 = arith.constant 0 : i32
    return %arg0, %c0_i32, %c0_i32_0 : i32, i32, i32
  }
  func.func @transform_4(%arg0: i32, %arg1: i32) -> (i32, i32, i32) {
    %c0_i32 = arith.constant 0 : i32
    %c0_i32_0 = arith.constant 0 : i32
    %c0_i32_1 = arith.constant 0 : i32
    return %arg0, %c0_i32, %c0_i32_0 : i32, i32, i32
  }
  func.func @transform_5(%arg0: i32, %arg1: i32) -> (i32, i32, i32) {
    %c0_i32 = arith.constant 0 : i32
    %c0_i32_0 = arith.constant 0 : i32
    %c0_i32_1 = arith.constant 0 : i32
    return %arg0, %c0_i32, %c0_i32_0 : i32, i32, i32
  }
  func.func @transform_6(%arg0: i32, %arg1: i32) -> (i32, i32, i32) {
    %c0_i32 = arith.constant 0 : i32
    %c0_i32_0 = arith.constant 0 : i32
    return %arg0, %arg1, %c0_i32 : i32, i32, i32
  }
  func.func @transform_7(%arg0: i32, %arg1: i32) -> (i32, i32, i32) {
    %c0_i32 = arith.constant 0 : i32
    %c0_i32_0 = arith.constant 0 : i32
    return %arg0, %arg1, %c0_i32 : i32, i32, i32
  }
  func.func @transform_8(%arg0: i32, %arg1: i32) -> (i32, i32, i32) {
    %c0_i32 = arith.constant 0 : i32
    %c0_i32_0 = arith.constant 0 : i32
    return %arg0, %arg1, %c0_i32 : i32, i32, i32
  }
  func.func @transform_9(%arg0: i32, %arg1: i32) -> (i32, i32, i32) {
    %c0_i32 = arith.constant 0 : i32
    %c0_i32_0 = arith.constant 0 : i32
    return %arg0, %c0_i32, %arg1 : i32, i32, i32
  }
  func.func @transform_10(%arg0: i32, %arg1: i32) -> (i32, i32, i32) {
    %c0_i32 = arith.constant 0 : i32
    %c0_i32_0 = arith.constant 0 : i32
    return %arg0, %arg1, %c0_i32 : i32, i32, i32
  }
  func.func @transform_11(%arg0: i32, %arg1: i32) -> (i32, i32, i32) {
    %c0_i32 = arith.constant 0 : i32
    %c0_i32_0 = arith.constant 0 : i32
    return %arg0, %arg1, %c0_i32 : i32, i32, i32
  }
}

</mosaic_0001>

<llo_original>
// kernel: tpu_custom_call.1
$region0: #{tpu_custom_call.1}
  #allocation0 [shape = 'u32[]', space=smem, size = 0x4, offset = 0x4, fixed_abs, tag = 'smem constant byte address 0x4 - core index']
  #allocation1 [shape = 'u32[144,128]{1,0:T(1,128)}', space=vmem, size = 0x12000, scoped, tag = 'internal scratch']
  %s0 = inlined_call_operand.vmem [shape: f32[32,8], index: 0, kind: input, shape index: {}]
  %s1 = inlined_call_operand.vmem [shape: f32[2,8,16], index: 1, kind: input, shape index: {}]
  %s2 = inlined_call_operand.vmem [shape: f32[2,8,16], index: 2, kind: input, shape index: {}]
  %s3 = inlined_call_operand.vmem [shape: f32[2,1,16], index: 3, kind: input, shape index: {}]
  %s4 = inlined_call_operand.vmem [shape: f32[2,1,16], index: 4, kind: input, shape index: {}]
  %s5 = inlined_call_operand.vmem [shape: f32[2,1,16], index: 5, kind: input, shape index: {}]
  %s6 = inlined_call_operand.vmem [shape: f32[2,32,16], index: 6, kind: output, shape index: {0}]
  %s7 = inlined_call_operand.vmem [shape: bf16[2,32,16], index: 7, kind: output, shape index: {1}]
  %s8 = inlined_call_operand.vmem [shape: f32[2,32,16], index: 8, kind: output, shape index: {2}]
  %s9 = inlined_call_operand.hbm [shape: f32[2,1,32], index: 9, kind: output, shape index: {3}]
  %s10 = inlined_call_operand.vmem [shape: f32[2,32,1], index: 10, kind: output, shape index: {4}]
  %s11 = inlined_call_operand.vmem [shape: f32[2,32,1], index: 11, kind: output, shape index: {5}]
  %12 = xla_tuple %s6, %s7, %s8, %s9, %s10, %s11
  %s13 = sld [smem:[#allocation0]]
  $region97: #{tpu_custom_call.1} parent=0
    _
  %s15 = ssub.s32 1, %s13
  %s16 = scalar_select 0, %s15, %s13
  $region1: #{tpu_custom_call.1} parent=0
    #allocation2 [shape = 'u8[1024]{0}', space=vmem, size = 0x400, scoped, tag = 'output window, operand 3']
    #allocation3 [shape = 's32[2]{0}', space=sflag, size = 0x8, scoped, tag = 'scoped memory for tpu_custom_call.1']
    %17 = vsyncpa [#allocation3], 0
    %s18 = scalar_lea.sflag [#allocation3], 1
    %19 = vsyncpa %s18, 0
    loop: start=0, step=1, limit=4
    $region2: #{tpu_custom_call.1} parent=1 // loop_pre_header
      _
    $region3: #{tpu_custom_call.1} parent=1 // loop_header
      %s21 = sphi 0, %s25
      %p22 = scmp.ge.s32.totalorder %s21, 4
      %s28 = sphi 0, %s40
      %s29 = sphi 0, %s36
      %s30 = sphi 0, %s28
      %s31 = sphi 0, %s29
      %s32 = sphi 0, %s30
      %s33 = sphi 0, %s31
      %s43 = sphi 0, %s45
      %s46 = sphi 0, %s43
      %s47 = sphi 0, %s46
      %s63 = sphi 0, %s47
      %s69 = sphi 0, %s71
      %s72 = sphi 0, %s69
      %s73 = sphi 0, %s72
      %s89 = sphi 0, %s73
      %s95 = sphi 0, %s97
      %s98 = sphi 0, %s95
      %s99 = sphi 0, %s98
      %s115 = sphi 0, %s99
      %s121 = sphi 0, %s123
      %s124 = sphi 0, %s121
      %s125 = sphi 0, %s124
      %s141 = sphi 0, %s125
      %s147 = sphi 0, %s149
      %s150 = sphi 0, %s147
      %s151 = sphi 0, %s150
      %s167 = sphi 0, %s151
      %s173 = sphi 0, %s175
      %s176 = sphi 0, %s173
      %s177 = sphi 0, %s176
      %s193 = sphi 0, %s177
      %s201 = sphi 0, %s203
      %s204 = sphi 0, %s201
      %s205 = sphi 0, %s204
      %s221 = sphi 0, %s205
      %s229 = sphi 0, %s231
      %s232 = sphi 0, %s229
      %s233 = sphi 0, %s232
      %s249 = sphi 0, %s233
      %s257 = sphi 0, %s259
      %s260 = sphi 0, %s257
      %s261 = sphi 0, %s260
      %s277 = sphi 0, %s261
      %s285 = sphi 0, %s287
      %s288 = sphi 0, %s285
      %s289 = sphi 0, %s288
      %s305 = sphi 0, %s289
      %s313 = sphi 0, %s315
      %s316 = sphi 0, %s313
      %s317 = sphi 0, %s316
      %s333 = sphi 0, %s317
      %s341 = sphi 0, %s343
      %s344 = sphi 0, %s341
      %s345 = sphi 0, %s344
      %s361 = sphi 0, %s345
    $region4: #{tpu_custom_call.1} parent=1 // loop_header_branch
      %24 = sbr.rel (%p22) target = $region8
    $region5: #{tpu_custom_call.1} parent=1 // loop_body
      %s26 = ssub.s32 %s21, 1
      %s27 = ssub.s32 %s21, 2
      %s34 = sadd.s32 1, %s29
      %p35 = scmp.ge.s32.totalorder %s34, 1
      %s36 = scalar_select %p35, 0, %s34
      %s37 = sadd.s32 1, %s28
      %s38 = scalar_select %p35, %s37, %s28
      %p39 = scmp.ge.s32.totalorder %s38, 2
      %s40 = scalar_select %p39, 0, %s38
      %s41 = ssub.s32 %s29, %s36
      %p42 = scmp.eq.s32.totalorder %s41, 0
      %s44 = sadd.s32 %s43, 1
      %s45 = scalar_select %p42, %s43, %s44
      %p48 = pneg %p42
      %p49 = scmp.eq.s32.totalorder %s21, 1
      %p50 = por %p48, %p49
      %p51 = scmp.ne.s32.totalorder %s43, %s46
      %p52 = scmp.eq.s32.totalorder %s21, 0
      %p53 = por %p51, %p52
      %p54 = scmp.ne.s32.totalorder %s43, %s46
      %p55 = scmp.eq.s32.totalorder %s26, 1
      %p56 = por %p54, %p55
      %p57 = scmp.ne.s32.totalorder %s46, %s47
      %p58 = scmp.eq.s32.totalorder %s26, 0
      %p59 = por %p57, %p58
      %p60 = scmp.ne.s32.totalorder %s46, %s47
      %p61 = scmp.eq.s32.totalorder %s27, 1
      %p62 = por %p60, %p61
      %p64 = scmp.ne.s32.totalorder %s47, %s63
      %p65 = scmp.eq.s32.totalorder %s27, 0
      %p66 = por %p64, %p65
      %s67 = ssub.s32 %s28, %s40
      %p68 = scmp.eq.s32.totalorder %s67, 0
      %s70 = sadd.s32 %s69, 1
      %s71 = scalar_select %p68, %s69, %s70
      %p74 = pneg %p68
      %p75 = scmp.eq.s32.totalorder %s21, 1
      %p76 = por %p74, %p75
      %p77 = scmp.ne.s32.totalorder %s69, %s72
      %p78 = scmp.eq.s32.totalorder %s21, 0
      %p79 = por %p77, %p78
      %p80 = scmp.ne.s32.totalorder %s69, %s72
      %p81 = scmp.eq.s32.totalorder %s26, 1
      %p82 = por %p80, %p81
      %p83 = scmp.ne.s32.totalorder %s72, %s73
      %p84 = scmp.eq.s32.totalorder %s26, 0
      %p85 = por %p83, %p84
      %p86 = scmp.ne.s32.totalorder %s72, %s73
      %p87 = scmp.eq.s32.totalorder %s27, 1
      %p88 = por %p86, %p87
      %p90 = scmp.ne.s32.totalorder %s73, %s89
      %p91 = scmp.eq.s32.totalorder %s27, 0
      %p92 = por %p90, %p91
      %s93 = ssub.s32 %s28, %s40
      %p94 = scmp.eq.s32.totalorder %s93, 0
      %s96 = sadd.s32 %s95, 1
      %s97 = scalar_select %p94, %s95, %s96
      %p100 = pneg %p94
      %p101 = scmp.eq.s32.totalorder %s21, 1
      %p102 = por %p100, %p101
      %p103 = scmp.ne.s32.totalorder %s95, %s98
      %p104 = scmp.eq.s32.totalorder %s21, 0
      %p105 = por %p103, %p104
      %p106 = scmp.ne.s32.totalorder %s95, %s98
      %p107 = scmp.eq.s32.totalorder %s26, 1
      %p108 = por %p106, %p107
      %p109 = scmp.ne.s32.totalorder %s98, %s99
      %p110 = scmp.eq.s32.totalorder %s26, 0
      %p111 = por %p109, %p110
      %p112 = scmp.ne.s32.totalorder %s98, %s99
      %p113 = scmp.eq.s32.totalorder %s27, 1
      %p114 = por %p112, %p113
      %p116 = scmp.ne.s32.totalorder %s99, %s115
      %p117 = scmp.eq.s32.totalorder %s27, 0
      %p118 = por %p116, %p117
      %s119 = ssub.s32 %s28, %s40
      %p120 = scmp.eq.s32.totalorder %s119, 0
      %s122 = sadd.s32 %s121, 1
      %s123 = scalar_select %p120, %s121, %s122
      %p126 = pneg %p120
      %p127 = scmp.eq.s32.totalorder %s21, 1
      %p128 = por %p126, %p127
      %p129 = scmp.ne.s32.totalorder %s121, %s124
      %p130 = scmp.eq.s32.totalorder %s21, 0
      %p131 = por %p129, %p130
      %p132 = scmp.ne.s32.totalorder %s121, %s124
      %p133 = scmp.eq.s32.totalorder %s26, 1
      %p134 = por %p132, %p133
      %p135 = scmp.ne.s32.totalorder %s124, %s125
      %p136 = scmp.eq.s32.totalorder %s26, 0
      %p137 = por %p135, %p136
      %p138 = scmp.ne.s32.totalorder %s124, %s125
      %p139 = scmp.eq.s32.totalorder %s27, 1
      %p140 = por %p138, %p139
      %p142 = scmp.ne.s32.totalorder %s125, %s141
      %p143 = scmp.eq.s32.totalorder %s27, 0
      %p144 = por %p142, %p143
      %s145 = ssub.s32 %s28, %s40
      %p146 = scmp.eq.s32.totalorder %s145, 0
      %s148 = sadd.s32 %s147, 1
      %s149 = scalar_select %p146, %s147, %s148
      %p152 = pneg %p146
      %p153 = scmp.eq.s32.totalorder %s21, 1
      %p154 = por %p152, %p153
      %p155 = scmp.ne.s32.totalorder %s147, %s150
      %p156 = scmp.eq.s32.totalorder %s21, 0
      %p157 = por %p155, %p156
      %p158 = scmp.ne.s32.totalorder %s147, %s150
      %p159 = scmp.eq.s32.totalorder %s26, 1
      %p160 = por %p158, %p159
      %p161 = scmp.ne.s32.totalorder %s150, %s151
      %p162 = scmp.eq.s32.totalorder %s26, 0
      %p163 = por %p161, %p162
      %p164 = scmp.ne.s32.totalorder %s150, %s151
      %p165 = scmp.eq.s32.totalorder %s27, 1
      %p166 = por %p164, %p165
      %p168 = scmp.ne.s32.totalorder %s151, %s167
      %p169 = scmp.eq.s32.totalorder %s27, 0
      %p170 = por %p168, %p169
      %s171 = ssub.s32 %s28, %s40
      %p172 = scmp.eq.s32.totalorder %s171, 0
      %s174 = sadd.s32 %s173, 1
      %s175 = scalar_select %p172, %s173, %s174
      %p178 = pneg %p172
      %p179 = scmp.eq.s32.totalorder %s21, 1
      %p180 = por %p178, %p179
      %p181 = scmp.ne.s32.totalorder %s173, %s176
      %p182 = scmp.eq.s32.totalorder %s21, 0
      %p183 = por %p181, %p182
      %p184 = scmp.ne.s32.totalorder %s173, %s176
      %p185 = scmp.eq.s32.totalorder %s26, 1
      %p186 = por %p184, %p185
      %p187 = scmp.ne.s32.totalorder %s176, %s177
      %p188 = scmp.eq.s32.totalorder %s26, 0
      %p189 = por %p187, %p188
      %p190 = scmp.ne.s32.totalorder %s176, %s177
      %p191 = scmp.eq.s32.totalorder %s27, 1
      %p192 = por %p190, %p191
      %p194 = scmp.ne.s32.totalorder %s177, %s193
      %p195 = scmp.eq.s32.totalorder %s27, 0
      %p196 = por %p194, %p195
      %s197 = ssub.s32 %s28, %s40
      %s198 = ssub.s32 %s29, %s36
      %s199 = sor.u32 %s197, %s198
      %p200 = scmp.eq.s32.totalorder %s199, 0
      %s202 = sadd.s32 %s201, 1
      %s203 = scalar_select %p200, %s201, %s202
      %p206 = pneg %p200
      %p207 = scmp.eq.s32.totalorder %s21, 1
      %p208 = por %p206, %p207
      %p209 = scmp.ne.s32.totalorder %s201, %s204
      %p210 = scmp.eq.s32.totalorder %s21, 0
      %p211 = por %p209, %p210
      %p212 = scmp.ne.s32.totalorder %s201, %s204
      %p213 = scmp.eq.s32.totalorder %s26, 1
      %p214 = por %p212, %p213
      %p215 = scmp.ne.s32.totalorder %s204, %s205
      %p216 = scmp.eq.s32.totalorder %s26, 0
      %p217 = por %p215, %p216
      %p218 = scmp.ne.s32.totalorder %s204, %s205
      %p219 = scmp.eq.s32.totalorder %s27, 1
      %p220 = por %p218, %p219
      %p222 = scmp.ne.s32.totalorder %s205, %s221
      %p223 = scmp.eq.s32.totalorder %s27, 0
      %p224 = por %p222, %p223
      %s225 = ssub.s32 %s28, %s40
      %s226 = ssub.s32 %s29, %s36
      %s227 = sor.u32 %s225, %s226
      %p228 = scmp.eq.s32.totalorder %s227, 0
      %s230 = sadd.s32 %s229, 1
      %s231 = scalar_select %p228, %s229, %s230
      %p234 = pneg %p228
      %p235 = scmp.eq.s32.totalorder %s21, 1
      %p236 = por %p234, %p235
      %p237 = scmp.ne.s32.totalorder %s229, %s232
      %p238 = scmp.eq.s32.totalorder %s21, 0
      %p239 = por %p237, %p238
      %p240 = scmp.ne.s32.totalorder %s229, %s232
      %p241 = scmp.eq.s32.totalorder %s26, 1
      %p242 = por %p240, %p241
      %p243 = scmp.ne.s32.totalorder %s232, %s233
      %p244 = scmp.eq.s32.totalorder %s26, 0
      %p245 = por %p243, %p244
      %p246 = scmp.ne.s32.totalorder %s232, %s233
      %p247 = scmp.eq.s32.totalorder %s27, 1
      %p248 = por %p246, %p247
      %p250 = scmp.ne.s32.totalorder %s233, %s249
      %p251 = scmp.eq.s32.totalorder %s27, 0
      %p252 = por %p250, %p251
      %s253 = ssub.s32 %s28, %s40
      %s254 = ssub.s32 %s29, %s36
      %s255 = sor.u32 %s253, %s254
      %p256 = scmp.eq.s32.totalorder %s255, 0
      %s258 = sadd.s32 %s257, 1
      %s259 = scalar_select %p256, %s257, %s258
      %p262 = pneg %p256
      %p263 = scmp.eq.s32.totalorder %s21, 1
      %p264 = por %p262, %p263
      %p265 = scmp.ne.s32.totalorder %s257, %s260
      %p266 = scmp.eq.s32.totalorder %s21, 0
      %p267 = por %p265, %p266
      %p268 = scmp.ne.s32.totalorder %s257, %s260
      %p269 = scmp.eq.s32.totalorder %s26, 1
      %p270 = por %p268, %p269
      %p271 = scmp.ne.s32.totalorder %s260, %s261
      %p272 = scmp.eq.s32.totalorder %s26, 0
      %p273 = por %p271, %p272
      %p274 = scmp.ne.s32.totalorder %s260, %s261
      %p275 = scmp.eq.s32.totalorder %s27, 1
      %p276 = por %p274, %p275
      %p278 = scmp.ne.s32.totalorder %s261, %s277
      %p279 = scmp.eq.s32.totalorder %s27, 0
      %p280 = por %p278, %p279
      %s281 = ssub.s32 %s28, %s40
      %s282 = ssub.s32 %s29, %s36
      %s283 = sor.u32 %s281, %s282
      %p284 = scmp.eq.s32.totalorder %s283, 0
      %s286 = sadd.s32 %s285, 1
      %s287 = scalar_select %p284, %s285, %s286
      %p290 = pneg %p284
      %p291 = scmp.eq.s32.totalorder %s21, 1
      %p292 = por %p290, %p291
      %p293 = scmp.ne.s32.totalorder %s285, %s288
      %p294 = scmp.eq.s32.totalorder %s21, 0
      %p295 = por %p293, %p294
      %p296 = scmp.ne.s32.totalorder %s285, %s288
      %p297 = scmp.eq.s32.totalorder %s26, 1
      %p298 = por %p296, %p297
      %p299 = scmp.ne.s32.totalorder %s288, %s289
      %p300 = scmp.eq.s32.totalorder %s26, 0
      %p301 = por %p299, %p300
      %p302 = scmp.ne.s32.totalorder %s288, %s289
      %p303 = scmp.eq.s32.totalorder %s27, 1
      %p304 = por %p302, %p303
      %p306 = scmp.ne.s32.totalorder %s289, %s305
      %p307 = scmp.eq.s32.totalorder %s27, 0
      %p308 = por %p306, %p307
      %s309 = ssub.s32 %s28, %s40
      %s310 = ssub.s32 %s29, %s36
      %s311 = sor.u32 %s309, %s310
      %p312 = scmp.eq.s32.totalorder %s311, 0
      %s314 = sadd.s32 %s313, 1
      %s315 = scalar_select %p312, %s313, %s314
      %p318 = pneg %p312
      %p319 = scmp.eq.s32.totalorder %s21, 1
      %p320 = por %p318, %p319
      %p321 = scmp.ne.s32.totalorder %s313, %s316
      %p322 = scmp.eq.s32.totalorder %s21, 0
      %p323 = por %p321, %p322
      %p324 = scmp.ne.s32.totalorder %s313, %s316
      %p325 = scmp.eq.s32.totalorder %s26, 1
      %p326 = por %p324, %p325
      %p327 = scmp.ne.s32.totalorder %s316, %s317
      %p328 = scmp.eq.s32.totalorder %s26, 0
      %p329 = por %p327, %p328
      %p330 = scmp.ne.s32.totalorder %s316, %s317
      %p331 = scmp.eq.s32.totalorder %s27, 1
      %p332 = por %p330, %p331
      %p334 = scmp.ne.s32.totalorder %s317, %s333
      %p335 = scmp.eq.s32.totalorder %s27, 0
      %p336 = por %p334, %p335
      %s337 = ssub.s32 %s28, %s40
      %s338 = ssub.s32 %s29, %s36
      %s339 = sor.u32 %s337, %s338
      %p340 = scmp.eq.s32.totalorder %s339, 0
      %s342 = sadd.s32 %s341, 1
      %s343 = scalar_select %p340, %s341, %s342
      %p346 = pneg %p340
      %p347 = scmp.eq.s32.totalorder %s21, 1
      %p348 = por %p346, %p347
      %p349 = scmp.ne.s32.totalorder %s341, %s344
      %p350 = scmp.eq.s32.totalorder %s21, 0
      %p351 = por %p349, %p350
      %p352 = scmp.ne.s32.totalorder %s341, %s344
      %p353 = scmp.eq.s32.totalorder %s26, 1
      %p354 = por %p352, %p353
      %p355 = scmp.ne.s32.totalorder %s344, %s345
      %p356 = scmp.eq.s32.totalorder %s26, 0
      %p357 = por %p355, %p356
      %p358 = scmp.ne.s32.totalorder %s344, %s345
      %p359 = scmp.eq.s32.totalorder %s27, 1
      %p360 = por %p358, %p359
      %p362 = scmp.ne.s32.totalorder %s345, %s361
      %p363 = scmp.eq.s32.totalorder %s27, 0
      %p364 = por %p362, %p363
      %p365 = scmp.le.s32.totalorder 1, %s21
      %p366 = scmp.lt.s32.totalorder %s21, 3
      %p367 = pnand %p365, %p366
      %p368 = pneg %p367
      // Predicated region
      $region9: #{tpu_custom_call.1} parent=5 // pred_check
        _
      $region10: #{tpu_custom_call.1} parent=5 // pred_check_branch
        %370 = sbr.rel (%p367) target = $region12
      $region11: #{tpu_custom_call.1} parent=5 // pred_region
        %s371 = ssub.s32 %s21, 1
        // Predicated region
        $region13: #{tpu_custom_call.1} parent=11 // pred_check
          %p372 = pneg %p59
        $region14: #{tpu_custom_call.1} parent=11 // pred_check_branch
          %374 = sbr.rel (%p372) target = $region16
        $region15: #{tpu_custom_call.1} parent=11 // pred_region
          %s375 = smul.u32 4, %s31
          %p376 = scmp.lt.s32.totalorder %s375, 3
          %s377 = scalar_select %p376, %s375, 3
          %s378 = smul.addr %s377, 8
          %s379 = scalar_lea.vmem %s0, %s378
          %s380 = smul.u32 4, %s31
        $region16: #{tpu_custom_call.1} parent=11 // pred_fallthru
          _
      $region12: #{tpu_custom_call.1} parent=5 // pred_fallthru
        _
      %p381 = scmp.lt.s32.totalorder %s21, 2
      // Predicated region
      $region17: #{tpu_custom_call.1} parent=5 // pred_check
        %p382 = pneg %p381
      $region18: #{tpu_custom_call.1} parent=5 // pred_check_branch
        %384 = sbr.rel (%p382) target = $region20
      $region19: #{tpu_custom_call.1} parent=5 // pred_region
        // Predicated region
        $region21: #{tpu_custom_call.1} parent=19 // pred_check
          %p385 = pneg %p79
        $region22: #{tpu_custom_call.1} parent=19 // pred_check_branch
          %387 = sbr.rel (%p385) target = $region24
        $region23: #{tpu_custom_call.1} parent=19 // pred_region
          %p388 = scmp.lt.s32.totalorder %s28, 1
          %s389 = scalar_select %p388, %s28, 1
          %s390 = smul.addr %s389, 8
          %s391 = scalar_lea.vmem %s1, %s390
        $region24: #{tpu_custom_call.1} parent=19 // pred_fallthru
          _
        // Predicated region
        $region25: #{tpu_custom_call.1} parent=19 // pred_check
          %p392 = pneg %p105
        $region26: #{tpu_custom_call.1} parent=19 // pred_check_branch
          %394 = sbr.rel (%p392) target = $region28
        $region27: #{tpu_custom_call.1} parent=19 // pred_region
          %p395 = scmp.lt.s32.totalorder %s28, 1
          %s396 = scalar_select %p395, %s28, 1
          %s397 = smul.addr %s396, 8
          %s398 = scalar_lea.vmem %s2, %s397
        $region28: #{tpu_custom_call.1} parent=19 // pred_fallthru
          _
        // Predicated region
        $region29: #{tpu_custom_call.1} parent=19 // pred_check
          %p399 = pneg %p131
        $region30: #{tpu_custom_call.1} parent=19 // pred_check_branch
          %401 = sbr.rel (%p399) target = $region32
        $region31: #{tpu_custom_call.1} parent=19 // pred_region
          %p402 = scmp.lt.s32.totalorder %s28, 1
          %s403 = scalar_select %p402, %s28, 1
          %s404 = scalar_lea.vmem %s3, %s403
        $region32: #{tpu_custom_call.1} parent=19 // pred_fallthru
          _
        // Predicated region
        $region33: #{tpu_custom_call.1} parent=19 // pred_check
          %p405 = pneg %p157
        $region34: #{tpu_custom_call.1} parent=19 // pred_check_branch
          %407 = sbr.rel (%p405) target = $region36
        $region35: #{tpu_custom_call.1} parent=19 // pred_region
          %p408 = scmp.lt.s32.totalorder %s28, 1
          %s409 = scalar_select %p408, %s28, 1
          %s410 = scalar_lea.vmem %s4, %s409
        $region36: #{tpu_custom_call.1} parent=19 // pred_fallthru
          _
        // Predicated region
        $region37: #{tpu_custom_call.1} parent=19 // pred_check
          %p411 = pneg %p183
        $region38: #{tpu_custom_call.1} parent=19 // pred_check_branch
          %413 = sbr.rel (%p411) target = $region40
        $region39: #{tpu_custom_call.1} parent=19 // pred_region
          %p414 = scmp.lt.s32.totalorder %s28, 1
          %s415 = scalar_select %p414, %s28, 1
          %s416 = scalar_lea.vmem %s5, %s415
        $region40: #{tpu_custom_call.1} parent=19 // pred_fallthru
          _
      $region20: #{tpu_custom_call.1} parent=5 // pred_fallthru
        _
      %p417 = scmp.le.s32.totalorder 1, %s21
      %p418 = scmp.lt.s32.totalorder %s21, 3
      %p419 = pnand %p417, %p418
      %p420 = pneg %p419
      // Predicated region
      $region41: #{tpu_custom_call.1} parent=5 // pred_check
        _
      $region42: #{tpu_custom_call.1} parent=5 // pred_check_branch
        %422 = sbr.rel (%p419) target = $region44
      $region43: #{tpu_custom_call.1} parent=5 // pred_region
        %s423 = ssub.s32 %s21, 1
        %s424 = smul.u32 4, %s31
        %p425 = scmp.lt.s32.totalorder %s424, 3
        %s426 = scalar_select %p425, %s424, 3
        %s427 = smul.addr %s426, 8
        %s428 = scalar_lea.vmem %s0, %s427
        %p429 = pneg %p59
        %p430 = pneg %p56
        %p431 = scmp.lt.s32.totalorder %s30, 1
        %s432 = scalar_select %p431, %s30, 1
        %s433 = smul.addr %s432, 8
        %s434 = scalar_lea.vmem %s1, %s433
        %p435 = pneg %p85
        %p436 = pneg %p82
        %p437 = scmp.lt.s32.totalorder %s30, 1
        %s438 = scalar_select %p437, %s30, 1
        %s439 = smul.addr %s438, 8
        %s440 = scalar_lea.vmem %s2, %s439
        %p441 = pneg %p111
        %p442 = pneg %p108
        %p443 = scmp.lt.s32.totalorder %s30, 1
        %s444 = scalar_select %p443, %s30, 1
        %s445 = scalar_lea.vmem %s3, %s444
        %p446 = pneg %p137
        %p447 = pneg %p134
        %p448 = scmp.lt.s32.totalorder %s30, 1
        %s449 = scalar_select %p448, %s30, 1
        %s450 = scalar_lea.vmem %s4, %s449
        %p451 = pneg %p163
        %p452 = pneg %p160
        %p453 = scmp.lt.s32.totalorder %s30, 1
        %s454 = scalar_select %p453, %s30, 1
        %s455 = scalar_lea.vmem %s5, %s454
        %p456 = pneg %p189
        %p457 = pneg %p186
        %p458 = pneg %p217
        %p459 = pneg %p214
        %s460 = smul.u32 4, %s31
        %p461 = scmp.lt.s32.totalorder %s30, 1
        %s462 = scalar_select %p461, %s30, 1
        %p463 = scmp.lt.s32.totalorder %s460, 3
        %s464 = scalar_select %p463, %s460, 3
        %s465 = smul.addr %s462, 4
        %s466 = sadd.s32 %s464, %s465
        %s467 = smul.addr %s466, 8
        %s468 = scalar_lea.vmem %s6, %s467
        %p469 = pneg %p245
        %p470 = pneg %p242
        %s471 = smul.u32 4, %s31
        %p472 = scmp.lt.s32.totalorder %s30, 1
        %s473 = scalar_select %p472, %s30, 1
        %p474 = scmp.lt.s32.totalorder %s471, 3
        %s475 = scalar_select %p474, %s471, 3
        %s476 = smul.addr %s473, 4
        %s477 = sadd.s32 %s475, %s476
        %s478 = smul.addr %s477, 4
        %s479 = scalar_lea.vmem %s7, %s478
        %p480 = pneg %p273
        %p481 = pneg %p270
        %s482 = smul.u32 4, %s31
        %p483 = scmp.lt.s32.totalorder %s30, 1
        %s484 = scalar_select %p483, %s30, 1
        %p485 = scmp.lt.s32.totalorder %s482, 3
        %s486 = scalar_select %p485, %s482, 3
        %s487 = smul.addr %s484, 4
        %s488 = sadd.s32 %s486, %s487
        %s489 = smul.addr %s488, 8
        %s490 = scalar_lea.vmem %s8, %s489
        %p491 = pneg %p301
        %p492 = pneg %p298
        %s493 = sand.u32 %s288, 1
        %s494 = scalar_lea.sflag [#allocation3], %s493
        %s495 = sand.u32 %s288, 1
        %s496 = scalar_lea.vmem [#allocation2], %s495
        %p497 = pneg %p329
        %p498 = pneg %p326
        %s499 = smul.u32 4, %s31
        %p500 = scmp.lt.s32.totalorder %s30, 1
        %s501 = scalar_select %p500, %s30, 1
        %p502 = scmp.lt.s32.totalorder %s499, 3
        %s503 = scalar_select %p502, %s499, 3
        %s504 = smul.addr %s501, 4
        %s505 = sadd.s32 %s503, %s504
        %s506 = smul.addr %s505, 8
        %s507 = scalar_lea.vmem %s10, %s506
        %p508 = pneg %p357
        %p509 = pneg %p354
        %s510 = smul.u32 4, %s31
        %p511 = scmp.lt.s32.totalorder %s30, 1
        %s512 = scalar_select %p511, %s30, 1
        %p513 = scmp.lt.s32.totalorder %s510, 3
        %s514 = scalar_select %p513, %s510, 3
        %s515 = smul.addr %s512, 4
        %s516 = sadd.s32 %s514, %s515
        %s517 = smul.addr %s516, 8
        %s518 = scalar_lea.vmem %s11, %s517
        %s519 = smul.u32 4, %s31
        %p520 = scmp.lt.s32.totalorder %s519, 3
        %s521 = scalar_select %p520, %s519, 3
        %s522 = smul.addr %s521, 8
        %s523 = scalar_lea.vmem %s0, %s522
        %s524 = smul.u32 4, %s31
        %p525 = scmp.lt.s32.totalorder %s30, 1
        %s526 = scalar_select %p525, %s30, 1
        %s527 = smul.addr %s526, 8
        %s528 = scalar_lea.vmem %s1, %s527
        %p529 = scmp.lt.s32.totalorder %s30, 1
        %s530 = scalar_select %p529, %s30, 1
        %s531 = smul.addr %s530, 8
        %s532 = scalar_lea.vmem %s2, %s531
        %p533 = scmp.lt.s32.totalorder %s30, 1
        %s534 = scalar_select %p533, %s30, 1
        %s535 = scalar_lea.vmem %s3, %s534
        %p536 = scmp.lt.s32.totalorder %s30, 1
        %s537 = scalar_select %p536, %s30, 1
        %s538 = scalar_lea.vmem %s4, %s537
        %p539 = scmp.lt.s32.totalorder %s30, 1
        %s540 = scalar_select %p539, %s30, 1
        %s541 = scalar_lea.vmem %s5, %s540
        %s542 = smul.u32 4, %s31
        %p543 = scmp.lt.s32.totalorder %s30, 1
        %s544 = scalar_select %p543, %s30, 1
        %p545 = scmp.lt.s32.totalorder %s542, 3
        %s546 = scalar_select %p545, %s542, 3
        %s547 = smul.addr %s544, 4
        %s548 = sadd.s32 %s546, %s547
        %s549 = smul.addr %s548, 8
        %s550 = scalar_lea.vmem %s6, %s549
        %s551 = smul.u32 4, %s31
        %s552 = smul.u32 4, %s31
        %p553 = scmp.lt.s32.totalorder %s30, 1
        %s554 = scalar_select %p553, %s30, 1
        %p555 = scmp.lt.s32.totalorder %s552, 3
        %s556 = scalar_select %p555, %s552, 3
        %s557 = smul.addr %s554, 4
        %s558 = sadd.s32 %s556, %s557
        %s559 = smul.addr %s558, 4
        %s560 = scalar_lea.vmem %s7, %s559
        %s561 = smul.u32 4, %s31
        %s562 = smul.u32 4, %s31
        %p563 = scmp.lt.s32.totalorder %s30, 1
        %s564 = scalar_select %p563, %s30, 1
        %p565 = scmp.lt.s32.totalorder %s562, 3
        %s566 = scalar_select %p565, %s562, 3
        %s567 = smul.addr %s564, 4
        %s568 = sadd.s32 %s566, %s567
        %s569 = smul.addr %s568, 8
        %s570 = scalar_lea.vmem %s8, %s569
        %s571 = smul.u32 4, %s31
        %s572 = smul.u32 4, %s31
        %p573 = scmp.lt.s32.totalorder %s30, 1
        %s574 = scalar_select %p573, %s30, 1
        %p575 = scmp.lt.s32.totalorder %s572, 3
        %s576 = scalar_select %p575, %s572, 3
        %s577 = smul.addr %s574, 4
        %s578 = sadd.s32 %s576, %s577
        %s579 = smul.addr %s578, 8
        %s580 = scalar_lea.vmem %s10, %s579
        %s581 = smul.u32 4, %s31
        %s582 = smul.u32 4, %s31
        %p583 = scmp.lt.s32.totalorder %s30, 1
        %s584 = scalar_select %p583, %s30, 1
        %p585 = scmp.lt.s32.totalorder %s582, 3
        %s586 = scalar_select %p585, %s582, 3
        %s587 = smul.addr %s584, 4
        %s588 = sadd.s32 %s586, %s587
        %s589 = smul.addr %s588, 8
        %s590 = scalar_lea.vmem %s11, %s589
        %s591 = smul.u32 4, %s31
        %v592 = vld [vmem:[%s523] sm:$0xff]
        %v593 = vld [vmem:[%s523 + $0x8] sm:$0xff]
        %v594 = vld [vmem:[%s523 + $0x10] sm:$0xff]
        %v595 = vld [vmem:[%s523 + $0x18] sm:$0xff]
        %v596 = vld [vmem:[%s528] sm:$0xff]
        %vm597 = vcmask 64512
        %v599 = vsel %vm597, %v592, 0
        %v602 = vsel %vm597, %v593, 0
        %v605 = vsel %vm597, %v594, 0
        %v608 = vsel %vm597, %v595, 0
        %610 = vmatprep.subr.mxu0 0.0
        %611 = vmatpush1.msra.mxu0 %v596
        %612 = vmatprep.subr.mxu0 0.0
        %613 = vmatpush1.msra.mxu0 0.0
        %614 = vmatprep.subr.mxu0 0.0
        %615 = vmatpush1.msra.mxu0 0.0
        %616 = vmatprep.subr.mxu0 0.0
        %617 = vmatpush1.msra.mxu0 0.0
        %618 = vmatprep.subr.mxu0 0.0
        %619 = vmatpush1.msra.mxu0 0.0
        %620 = vmatprep.subr.mxu0 0.0
        %621 = vmatpush1.msra.mxu0 0.0
        %622 = vmatprep.subr.mxu0 0.0
        %623 = vmatpush1.msra.mxu0 0.0
        %624 = vmatprep.subr.mxu0 0.0
        %625 = vmatpush1.msra.mxu0 0.0
        %626 = vmatprep.subr.mxu0 0.0
        %627 = vmatpush1.msra.mxu0 0.0
        %628 = vmatprep.subr.mxu0 0.0
        %629 = vmatpush1.msra.mxu0 0.0
        %630 = vmatprep.subr.mxu0 0.0
        %631 = vmatpush1.msra.mxu0 0.0
        %632 = vmatprep.subr.mxu0 0.0
        %633 = vmatpush1.msra.mxu0 0.0
        %634 = vmatprep.subr.mxu0 0.0
        %635 = vmatpush1.msra.mxu0 0.0
        %636 = vmatprep.subr.mxu0 0.0
        %637 = vmatpush1.msra.mxu0 0.0
        %638 = vmatprep.subr.mxu0 0.0
        %639 = vmatpush1.msra.mxu0 0.0
        %640 = vmatprep.subr.mxu0 0.0
        %641 = vmatpush1.msra.mxu0 0.0
        %642 = vmatprep.subr.mxu0 0.0
        %643 = vmatpush1.msra.mxu0 0.0
        %644 = vmatprep.subr.mxu0 0.0
        %645 = vmatpush1.msra.mxu0 0.0
        %646 = vmatprep.subr.mxu0 0.0
        %647 = vmatpush1.msra.mxu0 0.0
        %648 = vmatprep.subr.mxu0 0.0
        %649 = vmatpush1.msra.mxu0 0.0
        %650 = vmatprep.subr.mxu0 0.0
        %651 = vmatpush1.msra.mxu0 0.0
        %652 = vmatprep.subr.mxu0 0.0
        %653 = vmatpush1.msra.mxu0 0.0
        %654 = vmatprep.subr.mxu0 0.0
        %655 = vmatpush1.msra.mxu0 0.0
        %656 = vmatprep.subr.mxu0 0.0
        %657 = vmatpush1.msra.mxu0 0.0
        %658 = vmatprep.subr.mxu0 0.0
        %659 = vmatpush1.msra.mxu0 0.0
        %660 = vmatprep.subr.mxu0 0.0
        %661 = vmatpush1.msra.mxu0 0.0
        %662 = vmatprep.subr.mxu0 0.0
        %663 = vmatpush1.msra.mxu0 0.0
        %664 = vmatprep.subr.mxu0 0.0
        %665 = vmatpush1.msra.mxu0 0.0
        %666 = vmatprep.subr.mxu0 0.0
        %667 = vmatpush1.msra.mxu0 0.0
        %668 = vmatprep.subr.mxu0 0.0
        %669 = vmatpush1.msra.mxu0 0.0
        %670 = vmatprep.subr.mxu0 0.0
        %671 = vmatpush1.msra.mxu0 0.0
        %672 = vmatprep.subr.mxu0 0.0
        %673 = vmatpush1.msra.mxu0 0.0
        %674 = vmatprep.mubr.f32.mxu0 0.0
        %675 = vmatmul.mubr.f32.gmra.mrb[0].mxu0 %v599
        %v676 = vpop.f32.mrb[0].mxu0
        %v677 = vadd.f32 0.0, %v676
        %v678 = vpop.f32.mrb[0].mxu0
        %679 = vmatprep.mubr.f32.mxu0 0.0
        %680 = vmatmul.mubr.f32.gmra.mrb[0].mxu0 %v602
        %v681 = vpop.f32.mrb[0].mxu0
        %v682 = vadd.f32 0.0, %v681
        %v683 = vpop.f32.mrb[0].mxu0
        %684 = vmatprep.mubr.f32.mxu0 0.0
        %685 = vmatmul.mubr.f32.gmra.mrb[0].mxu0 %v605
        %v686 = vpop.f32.mrb[0].mxu0
        %v687 = vadd.f32 0.0, %v686
        %v688 = vpop.f32.mrb[0].mxu0
        %689 = vmatprep.mubr.f32.mxu0 0.0
        %690 = vmatmul.mubr.f32.gmra.mrb[0].mxu0 %v608
        %v691 = vpop.f32.mrb[0].mxu0
        %v692 = vadd.f32 0.0, %v691
        %v693 = vpop.f32.mrb[0].mxu0
        %694 = vdwg.mxu0
        %vm695 = vcmask 130048
        %696 = vst.msk [vmem:[%s550] sm:$0xff] %vm695, %v677
        %697 = vst.msk [vmem:[%s550 + $0x8] sm:$0xff] %vm695, %v682
        %698 = vst.msk [vmem:[%s550 + $0x10] sm:$0xff] %vm695, %v687
        %699 = vst.msk [vmem:[%s550 + $0x18] sm:$0xff] %vm695, %v692
        %v700 = vpack.c.bf16 %v682, %v677
        %v701 = vpack.c.bf16 %v692, %v687
        %v704 = vunpack.c.l.b16 %v700
        %v705 = vunpack.c.h.b16 %v700
        %v706 = vunpack.c.l.b16 %v701
        %v707 = vunpack.c.h.b16 %v701
        %v708 = vpack.c.b16 %v704, %v704
        %v709 = vpack.c.b16 %v705, %v705
        %v710 = vpack.c.b16 %v706, %v706
        %v711 = vpack.c.b16 %v707, %v707
        %vm716 = vcmask 125952
        %717 = vst.msk [vmem:[%s560] sm:$0xf] %vm716, %v708
        %718 = vst.msk [vmem:[%s560 + $0x4] sm:$0xf] %vm716, %v709
        %719 = vst.msk [vmem:[%s560 + $0x8] sm:$0xf] %vm716, %v710
        %720 = vst.msk [vmem:[%s560 + $0xc] sm:$0xf] %vm716, %v711
        %v721 = vld [vmem:[%s532] sm:$0xff]
        %722 = vmatprep.subr.mxu0 0.0
        %723 = vmatpush1.msra.mxu0 %v721
        %724 = vmatprep.subr.mxu0 0.0
        %725 = vmatpush1.msra.mxu0 0.0
        %726 = vmatprep.subr.mxu0 0.0
        %727 = vmatpush1.msra.mxu0 0.0
        %728 = vmatprep.subr.mxu0 0.0
        %729 = vmatpush1.msra.mxu0 0.0
        %730 = vmatprep.subr.mxu0 0.0
        %731 = vmatpush1.msra.mxu0 0.0
        %732 = vmatprep.subr.mxu0 0.0
        %733 = vmatpush1.msra.mxu0 0.0
        %734 = vmatprep.subr.mxu0 0.0
        %735 = vmatpush1.msra.mxu0 0.0
        %736 = vmatprep.subr.mxu0 0.0
        %737 = vmatpush1.msra.mxu0 0.0
        %738 = vmatprep.subr.mxu0 0.0
        %739 = vmatpush1.msra.mxu0 0.0
        %740 = vmatprep.subr.mxu0 0.0
        %741 = vmatpush1.msra.mxu0 0.0
        %742 = vmatprep.subr.mxu0 0.0
        %743 = vmatpush1.msra.mxu0 0.0
        %744 = vmatprep.subr.mxu0 0.0
        %745 = vmatpush1.msra.mxu0 0.0
        %746 = vmatprep.subr.mxu0 0.0
        %747 = vmatpush1.msra.mxu0 0.0
        %748 = vmatprep.subr.mxu0 0.0
        %749 = vmatpush1.msra.mxu0 0.0
        %750 = vmatprep.subr.mxu0 0.0
        %751 = vmatpush1.msra.mxu0 0.0
        %752 = vmatprep.subr.mxu0 0.0
        %753 = vmatpush1.msra.mxu0 0.0
        %754 = vmatprep.subr.mxu0 0.0
        %755 = vmatpush1.msra.mxu0 0.0
        %756 = vmatprep.subr.mxu0 0.0
        %757 = vmatpush1.msra.mxu0 0.0
        %758 = vmatprep.subr.mxu0 0.0
        %759 = vmatpush1.msra.mxu0 0.0
        %760 = vmatprep.subr.mxu0 0.0
        %761 = vmatpush1.msra.mxu0 0.0
        %762 = vmatprep.subr.mxu0 0.0
        %763 = vmatpush1.msra.mxu0 0.0
        %764 = vmatprep.subr.mxu0 0.0
        %765 = vmatpush1.msra.mxu0 0.0
        %766 = vmatprep.subr.mxu0 0.0
        %767 = vmatpush1.msra.mxu0 0.0
        %768 = vmatprep.subr.mxu0 0.0
        %769 = vmatpush1.msra.mxu0 0.0
        %770 = vmatprep.subr.mxu0 0.0
        %771 = vmatpush1.msra.mxu0 0.0
        %772 = vmatprep.subr.mxu0 0.0
        %773 = vmatpush1.msra.mxu0 0.0
        %774 = vmatprep.subr.mxu0 0.0
        %775 = vmatpush1.msra.mxu0 0.0
        %776 = vmatprep.subr.mxu0 0.0
        %777 = vmatpush1.msra.mxu0 0.0
        %778 = vmatprep.subr.mxu0 0.0
        %779 = vmatpush1.msra.mxu0 0.0
        %780 = vmatprep.subr.mxu0 0.0
        %781 = vmatpush1.msra.mxu0 0.0
        %782 = vmatprep.subr.mxu0 0.0
        %783 = vmatpush1.msra.mxu0 0.0
        %784 = vmatprep.subr.mxu0 0.0
        %785 = vmatpush1.msra.mxu0 0.0
        %786 = vmatprep.mubr.f32.mxu0 0.0
        %787 = vmatmul.mubr.f32.gmra.mrb[0].mxu0 %v599
        %v788 = vpop.f32.mrb[0].mxu0
        %v789 = vadd.f32 0.0, %v788
        %v790 = vpop.f32.mrb[0].mxu0
        %791 = vmatprep.mubr.f32.mxu0 0.0
        %792 = vmatmul.mubr.f32.gmra.mrb[0].mxu0 %v602
        %v793 = vpop.f32.mrb[0].mxu0
        %v794 = vadd.f32 0.0, %v793
        %v795 = vpop.f32.mrb[0].mxu0
        %796 = vmatprep.mubr.f32.mxu0 0.0
        %797 = vmatmul.mubr.f32.gmra.mrb[0].mxu0 %v605
        %v798 = vpop.f32.mrb[0].mxu0
        %v799 = vadd.f32 0.0, %v798
        %v800 = vpop.f32.mrb[0].mxu0
        %801 = vmatprep.mubr.f32.mxu0 0.0
        %802 = vmatmul.mubr.f32.gmra.mrb[0].mxu0 %v608
        %v803 = vpop.f32.mrb[0].mxu0
        %v804 = vadd.f32 0.0, %v803
        %v805 = vpop.f32.mrb[0].mxu0
        %806 = vdwg.mxu0
        %807 = vst.msk [vmem:[%s570] sm:$0xff] %vm695, %v789
        %808 = vst.msk [vmem:[%s570 + $0x8] sm:$0xff] %vm695, %v794
        %809 = vst.msk [vmem:[%s570 + $0x10] sm:$0xff] %vm695, %v799
        %810 = vst.msk [vmem:[%s570 + $0x18] sm:$0xff] %vm695, %v804
        %v811 = vld [vmem:[%s535] sm:$0x1]
        %v813 = vsel %vm695, %v811, 0
        %v816 = vsel %vm695, %v677, 0
        %v819 = vsel %vm695, %v682, 0
        %v822 = vsel %vm695, %v687, 0
        %v825 = vsel %vm695, %v692, 0
        %827 = vmatprep.subr.mxu0 0.0
        %828 = vmatpush1.xpose.msra.mxu0 %v816
        %829 = vmatprep.subr.mxu0 0.0
        %830 = vmatpush1.xpose.msra.mxu0 %v819
        %831 = vmatprep.subr.mxu0 0.0
        %832 = vmatpush1.xpose.msra.mxu0 %v822
        %833 = vmatprep.subr.mxu0 0.0
        %834 = vmatpush1.xpose.msra.mxu0 %v825
        %835 = vmatprep.subr.mxu0 0.0
        %836 = vmatpush1.xpose.msra.mxu0 0.0
        %837 = vmatprep.subr.mxu0 0.0
        %838 = vmatpush1.xpose.msra.mxu0 0.0
        %839 = vmatprep.subr.mxu0 0.0
        %840 = vmatpush1.xpose.msra.mxu0 0.0
        %841 = vmatprep.subr.mxu0 0.0
        %842 = vmatpush1.xpose.msra.mxu0 0.0
        %843 = vmatprep.subr.mxu0 0.0
        %844 = vmatpush1.xpose.msra.mxu0 0.0
        %845 = vmatprep.subr.mxu0 0.0
        %846 = vmatpush1.xpose.msra.mxu0 0.0
        %847 = vmatprep.subr.mxu0 0.0
        %848 = vmatpush1.xpose.msra.mxu0 0.0
        %849 = vmatprep.subr.mxu0 0.0
        %850 = vmatpush1.xpose.msra.mxu0 0.0
        %851 = vmatprep.subr.mxu0 0.0
        %852 = vmatpush1.xpose.msra.mxu0 0.0
        %853 = vmatprep.subr.mxu0 0.0
        %854 = vmatpush1.xpose.msra.mxu0 0.0
        %855 = vmatprep.subr.mxu0 0.0
        %856 = vmatpush1.xpose.msra.mxu0 0.0
        %857 = vmatprep.subr.mxu0 0.0
        %858 = vmatpush1.xpose.msra.mxu0 0.0
        %859 = vmatprep.subr.mxu0 0.0
        %860 = vmatpush1.xpose.msra.mxu0 0.0
        %861 = vmatprep.subr.mxu0 0.0
        %862 = vmatpush1.xpose.msra.mxu0 0.0
        %863 = vmatprep.subr.mxu0 0.0
        %864 = vmatpush1.xpose.msra.mxu0 0.0
        %865 = vmatprep.subr.mxu0 0.0
        %866 = vmatpush1.xpose.msra.mxu0 0.0
        %867 = vmatprep.subr.mxu0 0.0
        %868 = vmatpush1.xpose.msra.mxu0 0.0
        %869 = vmatprep.subr.mxu0 0.0
        %870 = vmatpush1.xpose.msra.mxu0 0.0
        %871 = vmatprep.subr.mxu0 0.0
        %872 = vmatpush1.xpose.msra.mxu0 0.0
        %873 = vmatprep.subr.mxu0 0.0
        %874 = vmatpush1.xpose.msra.mxu0 0.0
        %875 = vmatprep.subr.mxu0 0.0
        %876 = vmatpush1.xpose.msra.mxu0 0.0
        %877 = vmatprep.subr.mxu0 0.0
        %878 = vmatpush1.xpose.msra.mxu0 0.0
        %879 = vmatprep.subr.mxu0 0.0
        %880 = vmatpush1.xpose.msra.mxu0 0.0
        %881 = vmatprep.subr.mxu0 0.0
        %882 = vmatpush1.xpose.msra.mxu0 0.0
        %883 = vmatprep.subr.mxu0 0.0
        %884 = vmatpush1.xpose.msra.mxu0 0.0
        %885 = vmatprep.subr.mxu0 0.0
        %886 = vmatpush1.xpose.msra.mxu0 0.0
        %887 = vmatprep.subr.mxu0 0.0
        %888 = vmatpush1.xpose.msra.mxu0 0.0
        %889 = vmatprep.subr.mxu0 0.0
        %890 = vmatpush1.xpose.msra.mxu0 0.0
        %891 = vmatprep.mubr.f32.mxu0 0.0
        %892 = vmatmul.mubr.f32.gmra.mrb[0].mxu0 %v813
        %v893 = vpop.f32.mrb[0].mxu0
        %v894 = vadd.f32 0.0, %v893
        %v895 = vpop.f32.mrb[0].mxu0
        %896 = vdwg.mxu0
        %vm897 = vcmask 253952
        %898 = vst.msk [vmem:[%s496] sm:$0x1] %vm897, %v894
        %v899 = vld [vmem:[%s538] sm:$0x1]
        %v901 = vlaneseq
        %v902 = vshrl.u32 %v901, 7
        %v903 = vsub.s32 0, %v902
        %v904 = vrot.slane %v899, %v903
        %v906 = vmul.f32 %v677, %v904
        %v907 = vmul.f32 %v682, %v904
        %v908 = vmul.f32 %v687, %v904
        %v909 = vmul.f32 %v692, %v904
        %v910 = vsel %vm695, %v906, 0.0
        %911 = vadd.xlane.f32.xlu0 %v910
        %v912 = vpop.xlane.xlu0 %911
        %v913 = vsel %vm695, %v907, 0.0
        %914 = vadd.xlane.f32.xlu0 %v913
        %v915 = vpop.xlane.xlu0 %914
        %v916 = vsel %vm695, %v908, 0.0
        %917 = vadd.xlane.f32.xlu0 %v916
        %v918 = vpop.xlane.xlu0 %917
        %v919 = vsel %vm695, %v909, 0.0
        %920 = vadd.xlane.f32.xlu0 %v919
        %v921 = vpop.xlane.xlu0 %920
        %vm922 = vcmask 7168
        %923 = vst.msk [vmem:[%s580] sm:$0xff] %vm922, %v912
        %924 = vst.msk [vmem:[%s580 + $0x8] sm:$0xff] %vm922, %v915
        %925 = vst.msk [vmem:[%s580 + $0x10] sm:$0xff] %vm922, %v918
        %926 = vst.msk [vmem:[%s580 + $0x18] sm:$0xff] %vm922, %v921
        %v927 = vld [vmem:[%s541] sm:$0x1]
        %v929 = vlaneseq
        %v930 = vshrl.u32 %v929, 7
        %v931 = vsub.s32 0, %v930
        %v932 = vrot.slane %v927, %v931
        %v934 = vmul.f32 %v677, %v932
        %v935 = vmul.f32 %v682, %v932
        %v936 = vmul.f32 %v687, %v932
        %v937 = vmul.f32 %v692, %v932
        %v938 = vsel %vm695, %v934, 0.0
        %939 = vadd.xlane.f32.xlu0 %v938
        %v940 = vpop.xlane.xlu0 %939
        %v941 = vsel %vm695, %v935, 0.0
        %942 = vadd.xlane.f32.xlu0 %v941
        %v943 = vpop.xlane.xlu0 %942
        %v944 = vsel %vm695, %v936, 0.0
        %945 = vadd.xlane.f32.xlu0 %v944
        %v946 = vpop.xlane.xlu0 %945
        %v947 = vsel %vm695, %v937, 0.0
        %948 = vadd.xlane.f32.xlu0 %v947
        %v949 = vpop.xlane.xlu0 %948
        %950 = vst.msk [vmem:[%s590] sm:$0xff] %vm922, %v940
        %951 = vst.msk [vmem:[%s590 + $0x8] sm:$0xff] %vm922, %v943
        %952 = vst.msk [vmem:[%s590 + $0x10] sm:$0xff] %vm922, %v946
        %953 = vst.msk [vmem:[%s590 + $0x18] sm:$0xff] %vm922, %v949
        %s954 = smul.u32 4, %s31
        %p955 = scmp.lt.s32.totalorder %s30, 1
        %s956 = scalar_select %p955, %s30, 1
        %p957 = scmp.lt.s32.totalorder %s954, 3
        %s958 = scalar_select %p957, %s954, 3
        %s959 = smul.addr %s956, 4
        %s960 = sadd.s32 %s958, %s959
        %s961 = smul.addr %s960, 8
        %s962 = scalar_lea.vmem %s6, %s961
        %s963 = smul.u32 4, %s31
        %p964 = scmp.lt.s32.totalorder %s30, 1
        %s965 = scalar_select %p964, %s30, 1
        %p966 = scmp.lt.s32.totalorder %s963, 3
        %s967 = scalar_select %p966, %s963, 3
        %s968 = smul.addr %s965, 4
        %s969 = sadd.s32 %s967, %s968
        %s970 = smul.addr %s969, 4
        %s971 = scalar_lea.vmem %s7, %s970
        %s972 = smul.u32 4, %s31
        %p973 = scmp.lt.s32.totalorder %s30, 1
        %s974 = scalar_select %p973, %s30, 1
        %p975 = scmp.lt.s32.totalorder %s972, 3
        %s976 = scalar_select %p975, %s972, 3
        %s977 = smul.addr %s974, 4
        %s978 = sadd.s32 %s976, %s977
        %s979 = smul.addr %s978, 8
        %s980 = scalar_lea.vmem %s8, %s979
        %s981 = sand.u32 %s288, 1
        %s982 = scalar_lea.sflag [#allocation3], %s981
        %s983 = sand.u32 %s288, 1
        %s984 = scalar_lea.vmem [#allocation2], %s983
        %s985 = smul.u32 4, %s31
        %p986 = scmp.lt.s32.totalorder %s30, 1
        %s987 = scalar_select %p986, %s30, 1
        %p988 = scmp.lt.s32.totalorder %s985, 3
        %s989 = scalar_select %p988, %s985, 3
        %s990 = smul.addr %s987, 4
        %s991 = sadd.s32 %s989, %s990
        %s992 = smul.addr %s991, 8
        %s993 = scalar_lea.vmem %s10, %s992
        %s994 = smul.u32 4, %s31
        %p995 = scmp.lt.s32.totalorder %s30, 1
        %s996 = scalar_select %p995, %s30, 1
        %p997 = scmp.lt.s32.totalorder %s994, 3
        %s998 = scalar_select %p997, %s994, 3
        %s999 = smul.addr %s996, 4
        %s1000 = sadd.s32 %s998, %s999
        %s1001 = smul.addr %s1000, 8
        %s1002 = scalar_lea.vmem %s11, %s1001
        // Predicated region
        $region45: #{tpu_custom_call.1} parent=43 // pred_check
          %p1003 = pneg %p214
        $region46: #{tpu_custom_call.1} parent=43 // pred_check_branch
          %1005 = sbr.rel (%p1003) target = $region48
        $region47: #{tpu_custom_call.1} parent=43 // pred_region
          %s1006 = smul.u32 4, %s31
        $region48: #{tpu_custom_call.1} parent=43 // pred_fallthru
          _
        // Predicated region
        $region49: #{tpu_custom_call.1} parent=43 // pred_check
          %p1007 = pneg %p242
        $region50: #{tpu_custom_call.1} parent=43 // pred_check_branch
          %1009 = sbr.rel (%p1007) target = $region52
        $region51: #{tpu_custom_call.1} parent=43 // pred_region
          %s1010 = smul.u32 4, %s31
        $region52: #{tpu_custom_call.1} parent=43 // pred_fallthru
          _
        // Predicated region
        $region53: #{tpu_custom_call.1} parent=43 // pred_check
          %p1011 = pneg %p270
        $region54: #{tpu_custom_call.1} parent=43 // pred_check_branch
          %1013 = sbr.rel (%p1011) target = $region56
        $region55: #{tpu_custom_call.1} parent=43 // pred_region
          %s1014 = smul.u32 4, %s31
        $region56: #{tpu_custom_call.1} parent=43 // pred_fallthru
          _
        // Predicated region
        $region57: #{tpu_custom_call.1} parent=43 // pred_check
          %p1015 = pneg %p298
        $region58: #{tpu_custom_call.1} parent=43 // pred_check_branch
          %1017 = sbr.rel (%p1015) target = $region60
        $region59: #{tpu_custom_call.1} parent=43 // pred_region
          %s1019 = ssub.s32 16, 16
          %1020 = vsyncadd %s982, %s1019
          %s1021 = sadd.s32 %s31, %s30
          %s1022 = smul.addr %s1021, 16
          %s1023 = scalar_lea.hbm %s9, %s1022
          %s1025 = sshll.u32 %s984, 4
          %s1026 = int_to_ptr.vmem [resolvable:$true] %s1025
          %1028 = dma.vmem_to_hbm [thread:$0]  %s1026, 16, %s1023, %s982
        $region60: #{tpu_custom_call.1} parent=43 // pred_fallthru
          _
        // Predicated region
        $region61: #{tpu_custom_call.1} parent=43 // pred_check
          %p1029 = pneg %p326
        $region62: #{tpu_custom_call.1} parent=43 // pred_check_branch
          %1031 = sbr.rel (%p1029) target = $region64
        $region63: #{tpu_custom_call.1} parent=43 // pred_region
          %s1032 = smul.u32 4, %s31
        $region64: #{tpu_custom_call.1} parent=43 // pred_fallthru
          _
        // Predicated region
        $region65: #{tpu_custom_call.1} parent=43 // pred_check
          %p1033 = pneg %p354
        $region66: #{tpu_custom_call.1} parent=43 // pred_check_branch
          %1035 = sbr.rel (%p1033) target = $region68
        $region67: #{tpu_custom_call.1} parent=43 // pred_region
          %s1036 = smul.u32 4, %s31
        $region68: #{tpu_custom_call.1} parent=43 // pred_fallthru
          _
      $region44: #{tpu_custom_call.1} parent=5 // pred_fallthru
        _
      %p1037 = scmp.le.s32.totalorder 2, %s21
      // Predicated region
      $region69: #{tpu_custom_call.1} parent=5 // pred_check
        %p1038 = pneg %p1037
      $region70: #{tpu_custom_call.1} parent=5 // pred_check_branch
        %1040 = sbr.rel (%p1038) target = $region72
      $region71: #{tpu_custom_call.1} parent=5 // pred_region
        %s1041 = ssub.s32 %s21, 2
        // Predicated region
        $region73: #{tpu_custom_call.1} parent=71 // pred_check
          %p1042 = pneg %p220
        $region74: #{tpu_custom_call.1} parent=71 // pred_check_branch
          %1044 = sbr.rel (%p1042) target = $region76
        $region75: #{tpu_custom_call.1} parent=71 // pred_region
          %s1045 = smul.u32 4, %s33
          %p1046 = scmp.lt.s32.totalorder %s32, 1
          %s1047 = scalar_select %p1046, %s32, 1
          %p1048 = scmp.lt.s32.totalorder %s1045, 3
          %s1049 = scalar_select %p1048, %s1045, 3
          %s1050 = smul.addr %s1047, 4
          %s1051 = sadd.s32 %s1049, %s1050
          %s1052 = smul.addr %s1051, 8
          %s1053 = scalar_lea.vmem %s6, %s1052
        $region76: #{tpu_custom_call.1} parent=71 // pred_fallthru
          _
        // Predicated region
        $region77: #{tpu_custom_call.1} parent=71 // pred_check
          %p1054 = pneg %p248
        $region78: #{tpu_custom_call.1} parent=71 // pred_check_branch
          %1056 = sbr.rel (%p1054) target = $region80
        $region79: #{tpu_custom_call.1} parent=71 // pred_region
          %s1057 = smul.u32 4, %s33
          %p1058 = scmp.lt.s32.totalorder %s32, 1
          %s1059 = scalar_select %p1058, %s32, 1
          %p1060 = scmp.lt.s32.totalorder %s1057, 3
          %s1061 = scalar_select %p1060, %s1057, 3
          %s1062 = smul.addr %s1059, 4
          %s1063 = sadd.s32 %s1061, %s1062
          %s1064 = smul.addr %s1063, 4
          %s1065 = scalar_lea.vmem %s7, %s1064
        $region80: #{tpu_custom_call.1} parent=71 // pred_fallthru
          _
        // Predicated region
        $region81: #{tpu_custom_call.1} parent=71 // pred_check
          %p1066 = pneg %p276
        $region82: #{tpu_custom_call.1} parent=71 // pred_check_branch
          %1068 = sbr.rel (%p1066) target = $region84
        $region83: #{tpu_custom_call.1} parent=71 // pred_region
          %s1069 = smul.u32 4, %s33
          %p1070 = scmp.lt.s32.totalorder %s32, 1
          %s1071 = scalar_select %p1070, %s32, 1
          %p1072 = scmp.lt.s32.totalorder %s1069, 3
          %s1073 = scalar_select %p1072, %s1069, 3
          %s1074 = smul.addr %s1071, 4
          %s1075 = sadd.s32 %s1073, %s1074
          %s1076 = smul.addr %s1075, 8
          %s1077 = scalar_lea.vmem %s8, %s1076
        $region84: #{tpu_custom_call.1} parent=71 // pred_fallthru
          _
        // Predicated region
        $region85: #{tpu_custom_call.1} parent=71 // pred_check
          %p1078 = pneg %p304
        $region86: #{tpu_custom_call.1} parent=71 // pred_check_branch
          %1080 = sbr.rel (%p1078) target = $region88
        $region87: #{tpu_custom_call.1} parent=71 // pred_region
          %s1081 = sand.u32 %s289, 1
          %s1082 = scalar_lea.sflag [#allocation3], %s1081
          %s1083 = sand.u32 %s289, 1
          %s1084 = scalar_lea.vmem [#allocation2], %s1083
          %1085 = dma.done %s1082, 16
        $region88: #{tpu_custom_call.1} parent=71 // pred_fallthru
          _
        // Predicated region
        $region89: #{tpu_custom_call.1} parent=71 // pred_check
          %p1086 = pneg %p332
        $region90: #{tpu_custom_call.1} parent=71 // pred_check_branch
          %1088 = sbr.rel (%p1086) target = $region92
        $region91: #{tpu_custom_call.1} parent=71 // pred_region
          %s1089 = smul.u32 4, %s33
          %p1090 = scmp.lt.s32.totalorder %s32, 1
          %s1091 = scalar_select %p1090, %s32, 1
          %p1092 = scmp.lt.s32.totalorder %s1089, 3
          %s1093 = scalar_select %p1092, %s1089, 3
          %s1094 = smul.addr %s1091, 4
          %s1095 = sadd.s32 %s1093, %s1094
          %s1096 = smul.addr %s1095, 8
          %s1097 = scalar_lea.vmem %s10, %s1096
        $region92: #{tpu_custom_call.1} parent=71 // pred_fallthru
          _
        // Predicated region
        $region93: #{tpu_custom_call.1} parent=71 // pred_check
          %p1098 = pneg %p360
        $region94: #{tpu_custom_call.1} parent=71 // pred_check_branch
          %1100 = sbr.rel (%p1098) target = $region96
        $region95: #{tpu_custom_call.1} parent=71 // pred_region
          %s1101 = smul.u32 4, %s33
          %p1102 = scmp.lt.s32.totalorder %s32, 1
          %s1103 = scalar_select %p1102, %s32, 1
          %p1104 = scmp.lt.s32.totalorder %s1101, 3
          %s1105 = scalar_select %p1104, %s1101, 3
          %s1106 = smul.addr %s1103, 4
          %s1107 = sadd.s32 %s1105, %s1106
          %s1108 = smul.addr %s1107, 8
          %s1109 = scalar_lea.vmem %s11, %s1108
        $region96: #{tpu_custom_call.1} parent=71 // pred_fallthru
          _
      $region72: #{tpu_custom_call.1} parent=5 // pred_fallthru
        _
    $region6: #{tpu_custom_call.1} parent=1 // loop_footer
      %s25 = sadd.s32 1, %s21
    $region7: #{tpu_custom_call.1} parent=1 // loop_footer_branch
      %20 = sbr.rel target = $region3
    $region8: #{tpu_custom_call.1} parent=1 // loop_exit
      _
    %1110 = vsyncpa [#allocation3], 1
    %s1111 = scalar_lea.sflag [#allocation3], 1
    %1112 = vsyncpa %s1111, 1

</llo_original>
